<compile_context>
chip_gen: v5e
topology: v5e:2x2
jax: 0.10.0
libtpu: 0.0.40
codegen_flags: <defaults>
</compile_context>

<pallas_src>
import functools
import math

import jax
import jax.numpy as jnp
import numpy as np
from jax.experimental import pallas as pl
from jax.experimental.pallas import tpu as pltpu

_PAD_PENALTY = 1e30  # additive stand-in for the -inf key-padding mask


def _stack_batches(ref, bpg):
    """(bpg, R, C) ref -> (bpg*R, C) array via sublane concat (no reshape relayout)."""
    if bpg == 1:
        return ref[0]
    return jnp.concatenate([ref[b] for b in range(bpg)], axis=0)


def _soft_masked_attention_kernel(
    scaling_ref,            # SMEM (H,) f32 soft-mask scaling per head (scalar prefetch)
    q_ref,                  # (bpg, nq, E)
    k_ref, v_ref,           # (bpg, nk, E)
    mask_ref,               # (bpg, nq, nk) float soft mask in [0, 1]
    kpm_ref,                # (bpg, 1, nk) f32, 1.0 = padded key position
    w_ref,                  # (4, E, E) = [Wq^T, Wk^T, Wv^T, Wo^T]
    b_ref,                  # (4, 1, E) = [bq, bk, bv, bo]
    o_ref,                  # (bpg, nq, E)
    *, num_heads, head_dims, nq, nk, bpg,
):
    q_scale = 1.0 / math.sqrt(head_dims)

    q2d = _stack_batches(q_ref, bpg)   # (bpg*nq, E)
    k2d = _stack_batches(k_ref, bpg)   # (bpg*nk, E)
    v2d = _stack_batches(v_ref, bpg)   # (bpg*nk, E)

    # ---- full-width projections: 3 MXU ops instead of 3*H tiny (.,E)@(E,hd) ones ----
    q_full = (jnp.dot(q2d, w_ref[0], preferred_element_type=jnp.float32)
              + b_ref[0]) * q_scale                                          # (bpg*nq, E)
    k_full = jnp.dot(k2d, w_ref[1], preferred_element_type=jnp.float32) + b_ref[1]
    v_full = jnp.dot(v2d, w_ref[2], preferred_element_type=jnp.float32) + b_ref[2]

    # ---- per-(batch, head) QK^T with soft-mask bias + padding penalty folded in;
    #      scores stay in vregs and stack along sublanes (no VMEM scratch roundtrip) ---
    scores = []
    for b in range(bpg):
        inv_mask = 1.0 - mask_ref[b]                  # (nq, nk)
        pad_pen = _PAD_PENALTY * kpm_ref[b]           # (1, nk); broadcasts over rows
        q_b = q_full[b * nq:(b + 1) * nq, :]          # sublane-aligned slices (cheap)
        k_b = k_full[b * nk:(b + 1) * nk, :]
        for h in range(num_heads):
            lo = h * head_dims
            qh = q_b[:, lo:lo + head_dims]            # static 8-lane slices -> XLU slot
            kh = k_b[:, lo:lo + head_dims]
            s_h = jax.lax.dot_general(qh, kh, (((1,), (1,)), ((), ())),
                                      preferred_element_type=jnp.float32)    # (nq, nk)
            scores.append(s_h - scaling_ref[h] * inv_mask - pad_pen)
    s = jnp.concatenate(scores, axis=0)               # (bpg*H*nq, nk)

    # ---- one softmax over the whole stacked slab (1 max / 1 exp / 1 sum / 1 div) -----
    s_max = jnp.max(s, axis=-1, keepdims=True)
    p = jnp.exp(s - s_max)
    p = p / jnp.sum(p, axis=-1, keepdims=True)        # exact divide keeps 1e-4 tolerance
    # TODO(synk): nn.Dropout on attention weights is identity in eval mode; not applied.

    # ---- per-head PV, lane concat of heads, single output projection -----------------
    outs = []
    for b in range(bpg):
        v_b = v_full[b * nk:(b + 1) * nk, :]
        head_outs = []
        for h in range(num_heads):
            row = (b * num_heads + h) * nq
            p_h = p[row:row + nq, :]                                 # sublane slice
            vh = v_b[:, h * head_dims:(h + 1) * head_dims]           # (nk, hd)
            head_outs.append(jnp.dot(p_h, vh, preferred_element_type=jnp.float32))
        outs.append(jnp.concatenate(head_outs, axis=1))              # (nq, E) lane concat
    o_all = jnp.concatenate(outs, axis=0)                            # (bpg*nq, E)
    o_proj = jnp.dot(o_all, w_ref[3], preferred_element_type=jnp.float32) + b_ref[3]
    for b in range(bpg):
        o_ref[b] = o_proj[b * nq:(b + 1) * nq, :]


def prepare_params(params):
    """One-time weight re-layout (hoisted out of the per-call path).

    Torch Linear weights are (out, in).  The kernel wants W^T stacked on a leading
    axis (free leading-dim indexing, one DMA for all weights, one for all biases).
    """
    E = params["wq"].shape[0]
    w_all = jnp.stack([params["wq"].T, params["wk"].T,
                       params["wv"].T, params["wo"].T], axis=0)       # (4, E, E)
    b_all = jnp.stack([params["bq"], params["bk"],
                       params["bv"], params["bo"]], axis=0).reshape(4, 1, E)
    return w_all, b_all


def _default_batch_per_step(bs):
    """Fold the batch on single-TC chips (v5e/v6e); keep 1 batch/step on v7x (2 TCs)."""
    try:
        kind = jax.devices()[0].device_kind.lower()
    except Exception:  # pragma: no cover - defensive, detection is best-effort
        kind = ""
    two_tc = ("v7" in kind) or ("7x" in kind)
    return 1 if (two_tc and bs > 1) else bs


def soft_masked_attention(query, key, value, mask, w_all, b_all, scaling,
                          key_padding_mask=None, num_heads=8, batch_per_step=None):
    bs, nq, E = query.shape
    nk = key.shape[1]
    hd = E // num_heads
    assert hd * num_heads == E

    if key_padding_mask is None:
        kpm = jnp.zeros((bs, 1, nk), jnp.float32)
    else:
        kpm = key_padding_mask.astype(jnp.float32).reshape(bs, 1, nk)

    bpg = _default_batch_per_step(bs) if batch_per_step is None else batch_per_step
    assert bs % bpg == 0
    grid = (bs // bpg,)

    kernel = functools.partial(
        _soft_masked_attention_kernel,
        num_heads=num_heads, head_dims=hd, nq=nq, nk=nk, bpg=bpg)

    # index_maps receive the scalar-prefetch ref as a trailing positional arg.
    batched = lambda i, *_: (i, 0, 0)
    fixed = lambda i, *_: (0, 0, 0)

    grid_spec = pltpu.PrefetchScalarGridSpec(
        num_scalar_prefetch=1,                       # scaling -> SMEM
        grid=grid,
        in_specs=[
            pl.BlockSpec((bpg, nq, E), batched),     # query
            pl.BlockSpec((bpg, nk, E), batched),     # key
            pl.BlockSpec((bpg, nk, E), batched),     # value
            pl.BlockSpec((bpg, nq, nk), batched),    # soft mask
            pl.BlockSpec((bpg, 1, nk), batched),     # key padding mask (as float)
            pl.BlockSpec((4, E, E), fixed),          # [Wq^T, Wk^T, Wv^T, Wo^T]
            pl.BlockSpec((4, 1, E), fixed),          # [bq, bk, bv, bo]
        ],
        out_specs=pl.BlockSpec((bpg, nq, E), batched),
    )

    return pl.pallas_call(
        kernel,
        grid_spec=grid_spec,
        out_shape=jax.ShapeDtypeStruct((bs, nq, E), jnp.float32),
        compiler_params=pltpu.CompilerParams(
            dimension_semantics=("parallel",)),      # 2 TCs on v7x when grid=(bs,)
    )(scaling.astype(jnp.float32), query, key, value, mask, kpm, w_all, b_all)


def reference(query, key, value, mask, params, scaling, key_padding_mask=None, num_heads=8):
    """Pure-JAX replica of the PyTorch forward (eval mode)."""
    bs, nq, E = query.shape
    nk = key.shape[1]
    hd = E // num_heads
    q = query @ params["wq"].T + params["bq"]
    k = key @ params["wk"].T + params["bk"]
    v = value @ params["wv"].T + params["bv"]
    q = q.reshape(bs, nq, num_heads, hd).transpose(0, 2, 1, 3) / math.sqrt(hd)
    k = k.reshape(bs, nk, num_heads, hd).transpose(0, 2, 1, 3)
    v = v.reshape(bs, nk, num_heads, hd).transpose(0, 2, 1, 3)
    s = jnp.einsum("bhqd,bhkd->bhqk", q, k)
    s = s - (1.0 - mask)[:, None, :, :] * scaling[None, :, None, None]
    if key_padding_mask is not None:
        s = jnp.where(key_padding_mask[:, None, None, :], -jnp.inf, s)
    p = jax.nn.softmax(s, axis=-1)
    o = jnp.einsum("bhqk,bhkd->bhqd", p, v)
    o = o.transpose(0, 2, 1, 3).reshape(bs, nq, E)
    return o @ params["wo"].T + params["bo"]


if __name__ == "__main__":
    bs, num_inst, src_len = 2, 8, 16
    embed_dim, num_heads = 64, 8

    rng = jax.random.PRNGKey(0)
    keys = jax.random.split(rng, 16)

    def init_linear(kw, kb, fan_in, fan_out):
        w = jax.random.normal(kw, (fan_out, fan_in), jnp.float32) * 0.05
        b = jax.random.normal(kb, (fan_out,), jnp.float32) * 0.01
        return w, b

    wq, bq = init_linear(keys[0], keys[1], embed_dim, embed_dim)
    wk, bk = init_linear(keys[2], keys[3], embed_dim, embed_dim)
    wv, bv = init_linear(keys[4], keys[5], embed_dim, embed_dim)
    wo, bo = init_linear(keys[6], keys[7], embed_dim, embed_dim)
    params = dict(wq=wq, bq=bq, wk=wk, bk=bk, wv=wv, bv=bv, wo=wo, bo=bo)

    # default scaling factors from the module (learnable param, deterministic init)
    scaling = jnp.asarray([32, 32, 16, 16, 8, 8, 4, 4], jnp.float32)

    query = jax.random.normal(keys[8], (bs, num_inst, embed_dim), jnp.float32)
    key = jax.random.normal(keys[9], (bs, src_len, embed_dim), jnp.float32)
    value = jax.random.normal(keys[10], (bs, src_len, embed_dim), jnp.float32)
    mask = jax.random.uniform(keys[11], (bs, num_inst, src_len), jnp.float32)
    key_padding_mask = jnp.stack(
        [jnp.arange(src_len) >= src_len - 3,          # batch 0: last 3 positions padded
         jnp.zeros((src_len,), jnp.bool_)], axis=0)   # batch 1: no padding

    # One-time weight re-layout, hoisted out of the per-call path.
    w_all, b_all = prepare_params(params)

    attn_fn = jax.jit(functools.partial(soft_masked_attention, num_heads=num_heads))
    out = attn_fn(query, key, value, mask, w_all, b_all, scaling, key_padding_mask)
    out = jax.block_until_ready(out)

    ref = reference(query, key, value, mask, params, scaling,
                    key_padding_mask=key_padding_mask, num_heads=num_heads)
    np.testing.assert_allclose(np.asarray(out), np.asarray(ref), rtol=1e-4, atol=1e-4)

    print("KERNEL_OK")
</pallas_src>

<mosaic_0001>
module attributes {stable_mosaic.version = 11 : i64} {
  func.func @_soft_masked_attention_kernel(%arg0: i32, %arg1: memref<8xf32, #tpu.memory_space<smem>>, %arg2: memref<2x8x64xf32, #tpu.memory_space<vmem>>, %arg3: memref<2x16x64xf32, #tpu.memory_space<vmem>>, %arg4: memref<2x16x64xf32, #tpu.memory_space<vmem>>, %arg5: memref<2x8x16xf32, #tpu.memory_space<vmem>>, %arg6: memref<2x1x16xf32, #tpu.memory_space<vmem>>, %arg7: memref<4x64x64xf32, #tpu.memory_space<vmem>>, %arg8: memref<4x1x64xf32, #tpu.memory_space<vmem>>, %arg9: memref<2x8x64xf32, #tpu.memory_space<vmem>>) attributes {dimension_semantics = [#tpu.dimension_semantics<parallel>], iteration_bounds = array<i64: 1>, scalar_prefetch = 1 : i64, scratch_operands = 0 : i64, tpu.core_type = #tpu.core_type<tc>, window_params = [{transform_indices = @transform_0, window_bounds = array<i64: 2, 8, 64>}, {transform_indices = @transform_1, window_bounds = array<i64: 2, 16, 64>}, {transform_indices = @transform_2, window_bounds = array<i64: 2, 16, 64>}, {transform_indices = @transform_3, window_bounds = array<i64: 2, 8, 16>}, {transform_indices = @transform_4, window_bounds = array<i64: 2, 1, 16>}, {pipeline_mode = #tpu.pipeline_mode<synchronous>, transform_indices = @transform_5, window_bounds = array<i64: 4, 64, 64>}, {pipeline_mode = #tpu.pipeline_mode<synchronous>, transform_indices = @transform_6, window_bounds = array<i64: 4, 1, 64>}, {transform_indices = @transform_7, window_bounds = array<i64: 2, 8, 64>}]} {
    %c0 = arith.constant 0 : index
    %c0_0 = arith.constant 0 : index
    %c0_1 = arith.constant 0 : index
    %0 = vector.load %arg2[%c0, %c0_0, %c0_1] : memref<2x8x64xf32, #tpu.memory_space<vmem>>, vector<1x8x64xf32>
    %1 = vector.shape_cast %0 : vector<1x8x64xf32> to vector<8x64xf32>
    %c1 = arith.constant 1 : index
    %c0_2 = arith.constant 0 : index
    %c0_3 = arith.constant 0 : index
    %2 = vector.load %arg2[%c1, %c0_2, %c0_3] : memref<2x8x64xf32, #tpu.memory_space<vmem>>, vector<1x8x64xf32>
    %3 = vector.shape_cast %2 : vector<1x8x64xf32> to vector<8x64xf32>
    %4 = tpu.concatenate %1, %3 in 0 : vector<8x64xf32>, vector<8x64xf32> -> vector<16x64xf32>
    %c0_4 = arith.constant 0 : index
    %c0_5 = arith.constant 0 : index
    %c0_6 = arith.constant 0 : index
    %5 = vector.load %arg3[%c0_4, %c0_5, %c0_6] : memref<2x16x64xf32, #tpu.memory_space<vmem>>, vector<1x16x64xf32>
    %6 = vector.shape_cast %5 : vector<1x16x64xf32> to vector<16x64xf32>
    %c1_7 = arith.constant 1 : index
    %c0_8 = arith.constant 0 : index
    %c0_9 = arith.constant 0 : index
    %7 = vector.load %arg3[%c1_7, %c0_8, %c0_9] : memref<2x16x64xf32, #tpu.memory_space<vmem>>, vector<1x16x64xf32>
    %8 = vector.shape_cast %7 : vector<1x16x64xf32> to vector<16x64xf32>
    %9 = tpu.concatenate %6, %8 in 0 : vector<16x64xf32>, vector<16x64xf32> -> vector<32x64xf32>
    %c0_10 = arith.constant 0 : index
    %c0_11 = arith.constant 0 : index
    %c0_12 = arith.constant 0 : index
    %10 = vector.load %arg4[%c0_10, %c0_11, %c0_12] : memref<2x16x64xf32, #tpu.memory_space<vmem>>, vector<1x16x64xf32>
    %11 = vector.shape_cast %10 : vector<1x16x64xf32> to vector<16x64xf32>
    %c1_13 = arith.constant 1 : index
    %c0_14 = arith.constant 0 : index
    %c0_15 = arith.constant 0 : index
    %12 = vector.load %arg4[%c1_13, %c0_14, %c0_15] : memref<2x16x64xf32, #tpu.memory_space<vmem>>, vector<1x16x64xf32>
    %13 = vector.shape_cast %12 : vector<1x16x64xf32> to vector<16x64xf32>
    %14 = tpu.concatenate %11, %13 in 0 : vector<16x64xf32>, vector<16x64xf32> -> vector<32x64xf32>
    %c0_16 = arith.constant 0 : index
    %c0_17 = arith.constant 0 : index
    %c0_18 = arith.constant 0 : index
    %15 = vector.load %arg7[%c0_16, %c0_17, %c0_18] : memref<4x64x64xf32, #tpu.memory_space<vmem>>, vector<1x64x64xf32>
    %16 = vector.shape_cast %15 : vector<1x64x64xf32> to vector<64x64xf32>
    %cst = arith.constant dense<0.000000e+00> : vector<16x64xf32>
    %17 = tpu.matmul %4, %16, %cst {dimension_numbers = #tpu.dot_dimension_numbers<[1], [0], [0], [1], [0, 0, 1, 1], [], []>} : vector<16x64xf32>, vector<64x64xf32>, vector<16x64xf32> -> vector<16x64xf32>
    %c0_19 = arith.constant 0 : index
    %c0_20 = arith.constant 0 : index
    %c0_21 = arith.constant 0 : index
    %18 = vector.load %arg8[%c0_19, %c0_20, %c0_21] : memref<4x1x64xf32, #tpu.memory_space<vmem>>, vector<1x1x64xf32>
    %19 = vector.shape_cast %18 : vector<1x1x64xf32> to vector<1x64xf32>
    %20 = vector.broadcast %19 : vector<1x64xf32> to vector<16x64xf32>
    %21 = arith.addf %17, %20 : vector<16x64xf32>
    %cst_22 = arith.constant 0.353553385 : f32
    %22 = vector.broadcast %cst_22 : f32 to vector<16x64xf32>
    %23 = arith.mulf %21, %22 : vector<16x64xf32>
    %c1_23 = arith.constant 1 : index
    %c0_24 = arith.constant 0 : index
    %c0_25 = arith.constant 0 : index
    %24 = vector.load %arg7[%c1_23, %c0_24, %c0_25] : memref<4x64x64xf32, #tpu.memory_space<vmem>>, vector<1x64x64xf32>
    %25 = vector.shape_cast %24 : vector<1x64x64xf32> to vector<64x64xf32>
    %cst_26 = arith.constant dense<0.000000e+00> : vector<32x64xf32>
    %26 = tpu.matmul %9, %25, %cst_26 {dimension_numbers = #tpu.dot_dimension_numbers<[1], [0], [0], [1], [0, 0, 1, 1], [], []>} : vector<32x64xf32>, vector<64x64xf32>, vector<32x64xf32> -> vector<32x64xf32>
    %c1_27 = arith.constant 1 : index
    %c0_28 = arith.constant 0 : index
    %c0_29 = arith.constant 0 : index
    %27 = vector.load %arg8[%c1_27, %c0_28, %c0_29] : memref<4x1x64xf32, #tpu.memory_space<vmem>>, vector<1x1x64xf32>
    %28 = vector.shape_cast %27 : vector<1x1x64xf32> to vector<1x64xf32>
    %29 = vector.broadcast %28 : vector<1x64xf32> to vector<32x64xf32>
    %30 = arith.addf %26, %29 : vector<32x64xf32>
    %c2 = arith.constant 2 : index
    %c0_30 = arith.constant 0 : index
    %c0_31 = arith.constant 0 : index
    %31 = vector.load %arg7[%c2, %c0_30, %c0_31] : memref<4x64x64xf32, #tpu.memory_space<vmem>>, vector<1x64x64xf32>
    %32 = vector.shape_cast %31 : vector<1x64x64xf32> to vector<64x64xf32>
    %cst_32 = arith.constant dense<0.000000e+00> : vector<32x64xf32>
    %33 = tpu.matmul %14, %32, %cst_32 {dimension_numbers = #tpu.dot_dimension_numbers<[1], [0], [0], [1], [0, 0, 1, 1], [], []>} : vector<32x64xf32>, vector<64x64xf32>, vector<32x64xf32> -> vector<32x64xf32>
    %c2_33 = arith.constant 2 : index
    %c0_34 = arith.constant 0 : index
    %c0_35 = arith.constant 0 : index
    %34 = vector.load %arg8[%c2_33, %c0_34, %c0_35] : memref<4x1x64xf32, #tpu.memory_space<vmem>>, vector<1x1x64xf32>
    %35 = vector.shape_cast %34 : vector<1x1x64xf32> to vector<1x64xf32>
    %36 = vector.broadcast %35 : vector<1x64xf32> to vector<32x64xf32>
    %37 = arith.addf %33, %36 : vector<32x64xf32>
    %c0_36 = arith.constant 0 : index
    %c0_37 = arith.constant 0 : index
    %c0_38 = arith.constant 0 : index
    %38 = vector.load %arg5[%c0_36, %c0_37, %c0_38] : memref<2x8x16xf32, #tpu.memory_space<vmem>>, vector<1x8x16xf32>
    %39 = vector.shape_cast %38 : vector<1x8x16xf32> to vector<8x16xf32>
    %cst_39 = arith.constant 1.000000e+00 : f32
    %40 = vector.broadcast %cst_39 : f32 to vector<8x16xf32>
    %41 = arith.subf %40, %39 : vector<8x16xf32>
    %c0_40 = arith.constant 0 : index
    %c0_41 = arith.constant 0 : index
    %c0_42 = arith.constant 0 : index
    %42 = vector.load %arg6[%c0_40, %c0_41, %c0_42] : memref<2x1x16xf32, #tpu.memory_space<vmem>>, vector<1x1x16xf32>
    %43 = vector.shape_cast %42 : vector<1x1x16xf32> to vector<1x16xf32>
    %cst_43 = arith.constant 1.000000e+30 : f32
    %44 = vector.broadcast %cst_43 : f32 to vector<1x16xf32>
    %45 = arith.mulf %44, %43 : vector<1x16xf32>
    %46 = vector.extract_strided_slice %23 {offsets = [0, 0], sizes = [8, 64], strides = [1, 1]} : vector<16x64xf32> to vector<8x64xf32>
    %47 = vector.extract_strided_slice %30 {offsets = [0, 0], sizes = [16, 64], strides = [1, 1]} : vector<32x64xf32> to vector<16x64xf32>
    %48 = vector.extract_strided_slice %46 {offsets = [0, 0], sizes = [8, 8], strides = [1, 1]} : vector<8x64xf32> to vector<8x8xf32>
    %49 = vector.extract_strided_slice %47 {offsets = [0, 0], sizes = [16, 8], strides = [1, 1]} : vector<16x64xf32> to vector<16x8xf32>
    %cst_44 = arith.constant dense<0.000000e+00> : vector<8x16xf32>
    %50 = tpu.matmul %48, %49, %cst_44 {dimension_numbers = #tpu.dot_dimension_numbers<[1], [1], [0], [0], [0, 0, 1, 0], [], []>} : vector<8x8xf32>, vector<16x8xf32>, vector<8x16xf32> -> vector<8x16xf32>
    %c0_45 = arith.constant 0 : index
    %51 = memref.load %arg1[%c0_45] : memref<8xf32, #tpu.memory_space<smem>>
    %52 = vector.broadcast %51 : f32 to vector<8x16xf32>
    %53 = arith.mulf %52, %41 : vector<8x16xf32>
    %54 = arith.subf %50, %53 : vector<8x16xf32>
    %55 = vector.broadcast %45 : vector<1x16xf32> to vector<8x16xf32>
    %56 = arith.subf %54, %55 : vector<8x16xf32>
    %57 = vector.extract_strided_slice %46 {offsets = [0, 8], sizes = [8, 8], strides = [1, 1]} : vector<8x64xf32> to vector<8x8xf32>
    %58 = vector.extract_strided_slice %47 {offsets = [0, 8], sizes = [16, 8], strides = [1, 1]} : vector<16x64xf32> to vector<16x8xf32>
    %cst_46 = arith.constant dense<0.000000e+00> : vector<8x16xf32>
    %59 = tpu.matmul %57, %58, %cst_46 {dimension_numbers = #tpu.dot_dimension_numbers<[1], [1], [0], [0], [0, 0, 1, 0], [], []>} : vector<8x8xf32>, vector<16x8xf32>, vector<8x16xf32> -> vector<8x16xf32>
    %c1_47 = arith.constant 1 : index
    %60 = memref.load %arg1[%c1_47] : memref<8xf32, #tpu.memory_space<smem>>
    %61 = vector.broadcast %60 : f32 to vector<8x16xf32>
    %62 = arith.mulf %61, %41 : vector<8x16xf32>
    %63 = arith.subf %59, %62 : vector<8x16xf32>
    %64 = vector.broadcast %45 : vector<1x16xf32> to vector<8x16xf32>
    %65 = arith.subf %63, %64 : vector<8x16xf32>
    %66 = vector.extract_strided_slice %46 {offsets = [0, 16], sizes = [8, 8], strides = [1, 1]} : vector<8x64xf32> to vector<8x8xf32>
    %67 = vector.extract_strided_slice %47 {offsets = [0, 16], sizes = [16, 8], strides = [1, 1]} : vector<16x64xf32> to vector<16x8xf32>
    %cst_48 = arith.constant dense<0.000000e+00> : vector<8x16xf32>
    %68 = tpu.matmul %66, %67, %cst_48 {dimension_numbers = #tpu.dot_dimension_numbers<[1], [1], [0], [0], [0, 0, 1, 0], [], []>} : vector<8x8xf32>, vector<16x8xf32>, vector<8x16xf32> -> vector<8x16xf32>
    %c2_49 = arith.constant 2 : index
    %69 = memref.load %arg1[%c2_49] : memref<8xf32, #tpu.memory_space<smem>>
    %70 = vector.broadcast %69 : f32 to vector<8x16xf32>
    %71 = arith.mulf %70, %41 : vector<8x16xf32>
    %72 = arith.subf %68, %71 : vector<8x16xf32>
    %73 = vector.broadcast %45 : vector<1x16xf32> to vector<8x16xf32>
    %74 = arith.subf %72, %73 : vector<8x16xf32>
    %75 = vector.extract_strided_slice %46 {offsets = [0, 24], sizes = [8, 8], strides = [1, 1]} : vector<8x64xf32> to vector<8x8xf32>
    %76 = vector.extract_strided_slice %47 {offsets = [0, 24], sizes = [16, 8], strides = [1, 1]} : vector<16x64xf32> to vector<16x8xf32>
    %cst_50 = arith.constant dense<0.000000e+00> : vector<8x16xf32>
    %77 = tpu.matmul %75, %76, %cst_50 {dimension_numbers = #tpu.dot_dimension_numbers<[1], [1], [0], [0], [0, 0, 1, 0], [], []>} : vector<8x8xf32>, vector<16x8xf32>, vector<8x16xf32> -> vector<8x16xf32>
    %c3 = arith.constant 3 : index
    %78 = memref.load %arg1[%c3] : memref<8xf32, #tpu.memory_space<smem>>
    %79 = vector.broadcast %78 : f32 to vector<8x16xf32>
    %80 = arith.mulf %79, %41 : vector<8x16xf32>
    %81 = arith.subf %77, %80 : vector<8x16xf32>
    %82 = vector.broadcast %45 : vector<1x16xf32> to vector<8x16xf32>
    %83 = arith.subf %81, %82 : vector<8x16xf32>
    %84 = vector.extract_strided_slice %46 {offsets = [0, 32], sizes = [8, 8], strides = [1, 1]} : vector<8x64xf32> to vector<8x8xf32>
    %85 = vector.extract_strided_slice %47 {offsets = [0, 32], sizes = [16, 8], strides = [1, 1]} : vector<16x64xf32> to vector<16x8xf32>
    %cst_51 = arith.constant dense<0.000000e+00> : vector<8x16xf32>
    %86 = tpu.matmul %84, %85, %cst_51 {dimension_numbers = #tpu.dot_dimension_numbers<[1], [1], [0], [0], [0, 0, 1, 0], [], []>} : vector<8x8xf32>, vector<16x8xf32>, vector<8x16xf32> -> vector<8x16xf32>
    %c4 = arith.constant 4 : index
    %87 = memref.load %arg1[%c4] : memref<8xf32, #tpu.memory_space<smem>>
    %88 = vector.broadcast %87 : f32 to vector<8x16xf32>
    %89 = arith.mulf %88, %41 : vector<8x16xf32>
    %90 = arith.subf %86, %89 : vector<8x16xf32>
    %91 = vector.broadcast %45 : vector<1x16xf32> to vector<8x16xf32>
    %92 = arith.subf %90, %91 : vector<8x16xf32>
    %93 = vector.extract_strided_slice %46 {offsets = [0, 40], sizes = [8, 8], strides = [1, 1]} : vector<8x64xf32> to vector<8x8xf32>
    %94 = vector.extract_strided_slice %47 {offsets = [0, 40], sizes = [16, 8], strides = [1, 1]} : vector<16x64xf32> to vector<16x8xf32>
    %cst_52 = arith.constant dense<0.000000e+00> : vector<8x16xf32>
    %95 = tpu.matmul %93, %94, %cst_52 {dimension_numbers = #tpu.dot_dimension_numbers<[1], [1], [0], [0], [0, 0, 1, 0], [], []>} : vector<8x8xf32>, vector<16x8xf32>, vector<8x16xf32> -> vector<8x16xf32>
    %c5 = arith.constant 5 : index
    %96 = memref.load %arg1[%c5] : memref<8xf32, #tpu.memory_space<smem>>
    %97 = vector.broadcast %96 : f32 to vector<8x16xf32>
    %98 = arith.mulf %97, %41 : vector<8x16xf32>
    %99 = arith.subf %95, %98 : vector<8x16xf32>
    %100 = vector.broadcast %45 : vector<1x16xf32> to vector<8x16xf32>
    %101 = arith.subf %99, %100 : vector<8x16xf32>
    %102 = vector.extract_strided_slice %46 {offsets = [0, 48], sizes = [8, 8], strides = [1, 1]} : vector<8x64xf32> to vector<8x8xf32>
    %103 = vector.extract_strided_slice %47 {offsets = [0, 48], sizes = [16, 8], strides = [1, 1]} : vector<16x64xf32> to vector<16x8xf32>
    %cst_53 = arith.constant dense<0.000000e+00> : vector<8x16xf32>
    %104 = tpu.matmul %102, %103, %cst_53 {dimension_numbers = #tpu.dot_dimension_numbers<[1], [1], [0], [0], [0, 0, 1, 0], [], []>} : vector<8x8xf32>, vector<16x8xf32>, vector<8x16xf32> -> vector<8x16xf32>
    %c6 = arith.constant 6 : index
    %105 = memref.load %arg1[%c6] : memref<8xf32, #tpu.memory_space<smem>>
    %106 = vector.broadcast %105 : f32 to vector<8x16xf32>
    %107 = arith.mulf %106, %41 : vector<8x16xf32>
    %108 = arith.subf %104, %107 : vector<8x16xf32>
    %109 = vector.broadcast %45 : vector<1x16xf32> to vector<8x16xf32>
    %110 = arith.subf %108, %109 : vector<8x16xf32>
    %111 = vector.extract_strided_slice %46 {offsets = [0, 56], sizes = [8, 8], strides = [1, 1]} : vector<8x64xf32> to vector<8x8xf32>
    %112 = vector.extract_strided_slice %47 {offsets = [0, 56], sizes = [16, 8], strides = [1, 1]} : vector<16x64xf32> to vector<16x8xf32>
    %cst_54 = arith.constant dense<0.000000e+00> : vector<8x16xf32>
    %113 = tpu.matmul %111, %112, %cst_54 {dimension_numbers = #tpu.dot_dimension_numbers<[1], [1], [0], [0], [0, 0, 1, 0], [], []>} : vector<8x8xf32>, vector<16x8xf32>, vector<8x16xf32> -> vector<8x16xf32>
    %c7 = arith.constant 7 : index
    %114 = memref.load %arg1[%c7] : memref<8xf32, #tpu.memory_space<smem>>
    %115 = vector.broadcast %114 : f32 to vector<8x16xf32>
    %116 = arith.mulf %115, %41 : vector<8x16xf32>
    %117 = arith.subf %113, %116 : vector<8x16xf32>
    %118 = vector.broadcast %45 : vector<1x16xf32> to vector<8x16xf32>
    %119 = arith.subf %117, %118 : vector<8x16xf32>
    %c1_55 = arith.constant 1 : index
    %c0_56 = arith.constant 0 : index
    %c0_57 = arith.constant 0 : index
    %120 = vector.load %arg5[%c1_55, %c0_56, %c0_57] : memref<2x8x16xf32, #tpu.memory_space<vmem>>, vector<1x8x16xf32>
    %121 = vector.shape_cast %120 : vector<1x8x16xf32> to vector<8x16xf32>
    %cst_58 = arith.constant 1.000000e+00 : f32
    %122 = vector.broadcast %cst_58 : f32 to vector<8x16xf32>
    %123 = arith.subf %122, %121 : vector<8x16xf32>
    %c1_59 = arith.constant 1 : index
    %c0_60 = arith.constant 0 : index
    %c0_61 = arith.constant 0 : index
    %124 = vector.load %arg6[%c1_59, %c0_60, %c0_61] : memref<2x1x16xf32, #tpu.memory_space<vmem>>, vector<1x1x16xf32>
    %125 = vector.shape_cast %124 : vector<1x1x16xf32> to vector<1x16xf32>
    %cst_62 = arith.constant 1.000000e+30 : f32
    %126 = vector.broadcast %cst_62 : f32 to vector<1x16xf32>
    %127 = arith.mulf %126, %125 : vector<1x16xf32>
    %128 = vector.extract_strided_slice %23 {offsets = [8, 0], sizes = [8, 64], strides = [1, 1]} : vector<16x64xf32> to vector<8x64xf32>
    %129 = vector.extract_strided_slice %30 {offsets = [16, 0], sizes = [16, 64], strides = [1, 1]} : vector<32x64xf32> to vector<16x64xf32>
    %130 = vector.extract_strided_slice %128 {offsets = [0, 0], sizes = [8, 8], strides = [1, 1]} : vector<8x64xf32> to vector<8x8xf32>
    %131 = vector.extract_strided_slice %129 {offsets = [0, 0], sizes = [16, 8], strides = [1, 1]} : vector<16x64xf32> to vector<16x8xf32>
    %cst_63 = arith.constant dense<0.000000e+00> : vector<8x16xf32>
    %132 = tpu.matmul %130, %131, %cst_63 {dimension_numbers = #tpu.dot_dimension_numbers<[1], [1], [0], [0], [0, 0, 1, 0], [], []>} : vector<8x8xf32>, vector<16x8xf32>, vector<8x16xf32> -> vector<8x16xf32>
    %c0_64 = arith.constant 0 : index
    %133 = memref.load %arg1[%c0_64] : memref<8xf32, #tpu.memory_space<smem>>
    %134 = vector.broadcast %133 : f32 to vector<8x16xf32>
    %135 = arith.mulf %134, %123 : vector<8x16xf32>
    %136 = arith.subf %132, %135 : vector<8x16xf32>
    %137 = vector.broadcast %127 : vector<1x16xf32> to vector<8x16xf32>
    %138 = arith.subf %136, %137 : vector<8x16xf32>
    %139 = vector.extract_strided_slice %128 {offsets = [0, 8], sizes = [8, 8], strides = [1, 1]} : vector<8x64xf32> to vector<8x8xf32>
    %140 = vector.extract_strided_slice %129 {offsets = [0, 8], sizes = [16, 8], strides = [1, 1]} : vector<16x64xf32> to vector<16x8xf32>
    %cst_65 = arith.constant dense<0.000000e+00> : vector<8x16xf32>
    %141 = tpu.matmul %139, %140, %cst_65 {dimension_numbers = #tpu.dot_dimension_numbers<[1], [1], [0], [0], [0, 0, 1, 0], [], []>} : vector<8x8xf32>, vector<16x8xf32>, vector<8x16xf32> -> vector<8x16xf32>
    %c1_66 = arith.constant 1 : index
    %142 = memref.load %arg1[%c1_66] : memref<8xf32, #tpu.memory_space<smem>>
    %143 = vector.broadcast %142 : f32 to vector<8x16xf32>
    %144 = arith.mulf %143, %123 : vector<8x16xf32>
    %145 = arith.subf %141, %144 : vector<8x16xf32>
    %146 = vector.broadcast %127 : vector<1x16xf32> to vector<8x16xf32>
    %147 = arith.subf %145, %146 : vector<8x16xf32>
    %148 = vector.extract_strided_slice %128 {offsets = [0, 16], sizes = [8, 8], strides = [1, 1]} : vector<8x64xf32> to vector<8x8xf32>
    %149 = vector.extract_strided_slice %129 {offsets = [0, 16], sizes = [16, 8], strides = [1, 1]} : vector<16x64xf32> to vector<16x8xf32>
    %cst_67 = arith.constant dense<0.000000e+00> : vector<8x16xf32>
    %150 = tpu.matmul %148, %149, %cst_67 {dimension_numbers = #tpu.dot_dimension_numbers<[1], [1], [0], [0], [0, 0, 1, 0], [], []>} : vector<8x8xf32>, vector<16x8xf32>, vector<8x16xf32> -> vector<8x16xf32>
    %c2_68 = arith.constant 2 : index
    %151 = memref.load %arg1[%c2_68] : memref<8xf32, #tpu.memory_space<smem>>
    %152 = vector.broadcast %151 : f32 to vector<8x16xf32>
    %153 = arith.mulf %152, %123 : vector<8x16xf32>
    %154 = arith.subf %150, %153 : vector<8x16xf32>
    %155 = vector.broadcast %127 : vector<1x16xf32> to vector<8x16xf32>
    %156 = arith.subf %154, %155 : vector<8x16xf32>
    %157 = vector.extract_strided_slice %128 {offsets = [0, 24], sizes = [8, 8], strides = [1, 1]} : vector<8x64xf32> to vector<8x8xf32>
    %158 = vector.extract_strided_slice %129 {offsets = [0, 24], sizes = [16, 8], strides = [1, 1]} : vector<16x64xf32> to vector<16x8xf32>
    %cst_69 = arith.constant dense<0.000000e+00> : vector<8x16xf32>
    %159 = tpu.matmul %157, %158, %cst_69 {dimension_numbers = #tpu.dot_dimension_numbers<[1], [1], [0], [0], [0, 0, 1, 0], [], []>} : vector<8x8xf32>, vector<16x8xf32>, vector<8x16xf32> -> vector<8x16xf32>
    %c3_70 = arith.constant 3 : index
    %160 = memref.load %arg1[%c3_70] : memref<8xf32, #tpu.memory_space<smem>>
    %161 = vector.broadcast %160 : f32 to vector<8x16xf32>
    %162 = arith.mulf %161, %123 : vector<8x16xf32>
    %163 = arith.subf %159, %162 : vector<8x16xf32>
    %164 = vector.broadcast %127 : vector<1x16xf32> to vector<8x16xf32>
    %165 = arith.subf %163, %164 : vector<8x16xf32>
    %166 = vector.extract_strided_slice %128 {offsets = [0, 32], sizes = [8, 8], strides = [1, 1]} : vector<8x64xf32> to vector<8x8xf32>
    %167 = vector.extract_strided_slice %129 {offsets = [0, 32], sizes = [16, 8], strides = [1, 1]} : vector<16x64xf32> to vector<16x8xf32>
    %cst_71 = arith.constant dense<0.000000e+00> : vector<8x16xf32>
    %168 = tpu.matmul %166, %167, %cst_71 {dimension_numbers = #tpu.dot_dimension_numbers<[1], [1], [0], [0], [0, 0, 1, 0], [], []>} : vector<8x8xf32>, vector<16x8xf32>, vector<8x16xf32> -> vector<8x16xf32>
    %c4_72 = arith.constant 4 : index
    %169 = memref.load %arg1[%c4_72] : memref<8xf32, #tpu.memory_space<smem>>
    %170 = vector.broadcast %169 : f32 to vector<8x16xf32>
    %171 = arith.mulf %170, %123 : vector<8x16xf32>
    %172 = arith.subf %168, %171 : vector<8x16xf32>
    %173 = vector.broadcast %127 : vector<1x16xf32> to vector<8x16xf32>
    %174 = arith.subf %172, %173 : vector<8x16xf32>
    %175 = vector.extract_strided_slice %128 {offsets = [0, 40], sizes = [8, 8], strides = [1, 1]} : vector<8x64xf32> to vector<8x8xf32>
    %176 = vector.extract_strided_slice %129 {offsets = [0, 40], sizes = [16, 8], strides = [1, 1]} : vector<16x64xf32> to vector<16x8xf32>
    %cst_73 = arith.constant dense<0.000000e+00> : vector<8x16xf32>
    %177 = tpu.matmul %175, %176, %cst_73 {dimension_numbers = #tpu.dot_dimension_numbers<[1], [1], [0], [0], [0, 0, 1, 0], [], []>} : vector<8x8xf32>, vector<16x8xf32>, vector<8x16xf32> -> vector<8x16xf32>
    %c5_74 = arith.constant 5 : index
    %178 = memref.load %arg1[%c5_74] : memref<8xf32, #tpu.memory_space<smem>>
    %179 = vector.broadcast %178 : f32 to vector<8x16xf32>
    %180 = arith.mulf %179, %123 : vector<8x16xf32>
    %181 = arith.subf %177, %180 : vector<8x16xf32>
    %182 = vector.broadcast %127 : vector<1x16xf32> to vector<8x16xf32>
    %183 = arith.subf %181, %182 : vector<8x16xf32>
    %184 = vector.extract_strided_slice %128 {offsets = [0, 48], sizes = [8, 8], strides = [1, 1]} : vector<8x64xf32> to vector<8x8xf32>
    %185 = vector.extract_strided_slice %129 {offsets = [0, 48], sizes = [16, 8], strides = [1, 1]} : vector<16x64xf32> to vector<16x8xf32>
    %cst_75 = arith.constant dense<0.000000e+00> : vector<8x16xf32>
    %186 = tpu.matmul %184, %185, %cst_75 {dimension_numbers = #tpu.dot_dimension_numbers<[1], [1], [0], [0], [0, 0, 1, 0], [], []>} : vector<8x8xf32>, vector<16x8xf32>, vector<8x16xf32> -> vector<8x16xf32>
    %c6_76 = arith.constant 6 : index
    %187 = memref.load %arg1[%c6_76] : memref<8xf32, #tpu.memory_space<smem>>
    %188 = vector.broadcast %187 : f32 to vector<8x16xf32>
    %189 = arith.mulf %188, %123 : vector<8x16xf32>
    %190 = arith.subf %186, %189 : vector<8x16xf32>
    %191 = vector.broadcast %127 : vector<1x16xf32> to vector<8x16xf32>
    %192 = arith.subf %190, %191 : vector<8x16xf32>
    %193 = vector.extract_strided_slice %128 {offsets = [0, 56], sizes = [8, 8], strides = [1, 1]} : vector<8x64xf32> to vector<8x8xf32>
    %194 = vector.extract_strided_slice %129 {offsets = [0, 56], sizes = [16, 8], strides = [1, 1]} : vector<16x64xf32> to vector<16x8xf32>
    %cst_77 = arith.constant dense<0.000000e+00> : vector<8x16xf32>
    %195 = tpu.matmul %193, %194, %cst_77 {dimension_numbers = #tpu.dot_dimension_numbers<[1], [1], [0], [0], [0, 0, 1, 0], [], []>} : vector<8x8xf32>, vector<16x8xf32>, vector<8x16xf32> -> vector<8x16xf32>
    %c7_78 = arith.constant 7 : index
    %196 = memref.load %arg1[%c7_78] : memref<8xf32, #tpu.memory_space<smem>>
    %197 = vector.broadcast %196 : f32 to vector<8x16xf32>
    %198 = arith.mulf %197, %123 : vector<8x16xf32>
    %199 = arith.subf %195, %198 : vector<8x16xf32>
    %200 = vector.broadcast %127 : vector<1x16xf32> to vector<8x16xf32>
    %201 = arith.subf %199, %200 : vector<8x16xf32>
    %202 = tpu.concatenate %56, %65, %74, %83, %92, %101, %110, %119, %138, %147, %156, %165, %174, %183, %192, %201 in 0 : vector<8x16xf32>, vector<8x16xf32>, vector<8x16xf32>, vector<8x16xf32>, vector<8x16xf32>, vector<8x16xf32>, vector<8x16xf32>, vector<8x16xf32>, vector<8x16xf32>, vector<8x16xf32>, vector<8x16xf32>, vector<8x16xf32>, vector<8x16xf32>, vector<8x16xf32>, vector<8x16xf32>, vector<8x16xf32> -> vector<128x16xf32>
    %cst_79 = arith.constant dense<0xFF800000> : vector<128xf32>
    %203 = vector.multi_reduction <maximumf>, %202, %cst_79 [1] : vector<128x16xf32> to vector<128xf32>
    %204 = vector.shape_cast %203 : vector<128xf32> to vector<128x1xf32>
    %205 = vector.broadcast %204 : vector<128x1xf32> to vector<128x16xf32>
    %206 = arith.subf %202, %205 : vector<128x16xf32>
    %207 = math.exp %206 : vector<128x16xf32>
    %cst_80 = arith.constant dense<0.000000e+00> : vector<128xf32>
    %208 = vector.multi_reduction <add>, %207, %cst_80 [1] : vector<128x16xf32> to vector<128xf32>
    %209 = vector.shape_cast %208 : vector<128xf32> to vector<128x1xf32>
    %210 = vector.broadcast %209 : vector<128x1xf32> to vector<128x16xf32>
    %211 = arith.divf %207, %210 : vector<128x16xf32>
    %212 = vector.extract_strided_slice %37 {offsets = [0, 0], sizes = [16, 64], strides = [1, 1]} : vector<32x64xf32> to vector<16x64xf32>
    %213 = vector.extract_strided_slice %211 {offsets = [0, 0], sizes = [8, 16], strides = [1, 1]} : vector<128x16xf32> to vector<8x16xf32>
    %214 = vector.extract_strided_slice %212 {offsets = [0, 0], sizes = [16, 8], strides = [1, 1]} : vector<16x64xf32> to vector<16x8xf32>
    %cst_81 = arith.constant dense<0.000000e+00> : vector<8x8xf32>
    %215 = tpu.matmul %213, %214, %cst_81 {dimension_numbers = #tpu.dot_dimension_numbers<[1], [0], [0], [1], [0, 0, 1, 1], [], []>} : vector<8x16xf32>, vector<16x8xf32>, vector<8x8xf32> -> vector<8x8xf32>
    %216 = vector.extract_strided_slice %211 {offsets = [8, 0], sizes = [8, 16], strides = [1, 1]} : vector<128x16xf32> to vector<8x16xf32>
    %217 = vector.extract_strided_slice %212 {offsets = [0, 8], sizes = [16, 8], strides = [1, 1]} : vector<16x64xf32> to vector<16x8xf32>
    %cst_82 = arith.constant dense<0.000000e+00> : vector<8x8xf32>
    %218 = tpu.matmul %216, %217, %cst_82 {dimension_numbers = #tpu.dot_dimension_numbers<[1], [0], [0], [1], [0, 0, 1, 1], [], []>} : vector<8x16xf32>, vector<16x8xf32>, vector<8x8xf32> -> vector<8x8xf32>
    %219 = vector.extract_strided_slice %211 {offsets = [16, 0], sizes = [8, 16], strides = [1, 1]} : vector<128x16xf32> to vector<8x16xf32>
    %220 = vector.extract_strided_slice %212 {offsets = [0, 16], sizes = [16, 8], strides = [1, 1]} : vector<16x64xf32> to vector<16x8xf32>
    %cst_83 = arith.constant dense<0.000000e+00> : vector<8x8xf32>
    %221 = tpu.matmul %219, %220, %cst_83 {dimension_numbers = #tpu.dot_dimension_numbers<[1], [0], [0], [1], [0, 0, 1, 1], [], []>} : vector<8x16xf32>, vector<16x8xf32>, vector<8x8xf32> -> vector<8x8xf32>
    %222 = vector.extract_strided_slice %211 {offsets = [24, 0], sizes = [8, 16], strides = [1, 1]} : vector<128x16xf32> to vector<8x16xf32>
    %223 = vector.extract_strided_slice %212 {offsets = [0, 24], sizes = [16, 8], strides = [1, 1]} : vector<16x64xf32> to vector<16x8xf32>
    %cst_84 = arith.constant dense<0.000000e+00> : vector<8x8xf32>
    %224 = tpu.matmul %222, %223, %cst_84 {dimension_numbers = #tpu.dot_dimension_numbers<[1], [0], [0], [1], [0, 0, 1, 1], [], []>} : vector<8x16xf32>, vector<16x8xf32>, vector<8x8xf32> -> vector<8x8xf32>
    %225 = vector.extract_strided_slice %211 {offsets = [32, 0], sizes = [8, 16], strides = [1, 1]} : vector<128x16xf32> to vector<8x16xf32>
    %226 = vector.extract_strided_slice %212 {offsets = [0, 32], sizes = [16, 8], strides = [1, 1]} : vector<16x64xf32> to vector<16x8xf32>
    %cst_85 = arith.constant dense<0.000000e+00> : vector<8x8xf32>
    %227 = tpu.matmul %225, %226, %cst_85 {dimension_numbers = #tpu.dot_dimension_numbers<[1], [0], [0], [1], [0, 0, 1, 1], [], []>} : vector<8x16xf32>, vector<16x8xf32>, vector<8x8xf32> -> vector<8x8xf32>
    %228 = vector.extract_strided_slice %211 {offsets = [40, 0], sizes = [8, 16], strides = [1, 1]} : vector<128x16xf32> to vector<8x16xf32>
    %229 = vector.extract_strided_slice %212 {offsets = [0, 40], sizes = [16, 8], strides = [1, 1]} : vector<16x64xf32> to vector<16x8xf32>
    %cst_86 = arith.constant dense<0.000000e+00> : vector<8x8xf32>
    %230 = tpu.matmul %228, %229, %cst_86 {dimension_numbers = #tpu.dot_dimension_numbers<[1], [0], [0], [1], [0, 0, 1, 1], [], []>} : vector<8x16xf32>, vector<16x8xf32>, vector<8x8xf32> -> vector<8x8xf32>
    %231 = vector.extract_strided_slice %211 {offsets = [48, 0], sizes = [8, 16], strides = [1, 1]} : vector<128x16xf32> to vector<8x16xf32>
    %232 = vector.extract_strided_slice %212 {offsets = [0, 48], sizes = [16, 8], strides = [1, 1]} : vector<16x64xf32> to vector<16x8xf32>
    %cst_87 = arith.constant dense<0.000000e+00> : vector<8x8xf32>
    %233 = tpu.matmul %231, %232, %cst_87 {dimension_numbers = #tpu.dot_dimension_numbers<[1], [0], [0], [1], [0, 0, 1, 1], [], []>} : vector<8x16xf32>, vector<16x8xf32>, vector<8x8xf32> -> vector<8x8xf32>
    %234 = vector.extract_strided_slice %211 {offsets = [56, 0], sizes = [8, 16], strides = [1, 1]} : vector<128x16xf32> to vector<8x16xf32>
    %235 = vector.extract_strided_slice %212 {offsets = [0, 56], sizes = [16, 8], strides = [1, 1]} : vector<16x64xf32> to vector<16x8xf32>
    %cst_88 = arith.constant dense<0.000000e+00> : vector<8x8xf32>
    %236 = tpu.matmul %234, %235, %cst_88 {dimension_numbers = #tpu.dot_dimension_numbers<[1], [0], [0], [1], [0, 0, 1, 1], [], []>} : vector<8x16xf32>, vector<16x8xf32>, vector<8x8xf32> -> vector<8x8xf32>
    %237 = tpu.concatenate %215, %218, %221, %224, %227, %230, %233, %236 in 1 : vector<8x8xf32>, vector<8x8xf32>, vector<8x8xf32>, vector<8x8xf32>, vector<8x8xf32>, vector<8x8xf32>, vector<8x8xf32>, vector<8x8xf32> -> vector<8x64xf32>
    %238 = vector.extract_strided_slice %37 {offsets = [16, 0], sizes = [16, 64], strides = [1, 1]} : vector<32x64xf32> to vector<16x64xf32>
    %239 = vector.extract_strided_slice %211 {offsets = [64, 0], sizes = [8, 16], strides = [1, 1]} : vector<128x16xf32> to vector<8x16xf32>
    %240 = vector.extract_strided_slice %238 {offsets = [0, 0], sizes = [16, 8], strides = [1, 1]} : vector<16x64xf32> to vector<16x8xf32>
    %cst_89 = arith.constant dense<0.000000e+00> : vector<8x8xf32>
    %241 = tpu.matmul %239, %240, %cst_89 {dimension_numbers = #tpu.dot_dimension_numbers<[1], [0], [0], [1], [0, 0, 1, 1], [], []>} : vector<8x16xf32>, vector<16x8xf32>, vector<8x8xf32> -> vector<8x8xf32>
    %242 = vector.extract_strided_slice %211 {offsets = [72, 0], sizes = [8, 16], strides = [1, 1]} : vector<128x16xf32> to vector<8x16xf32>
    %243 = vector.extract_strided_slice %238 {offsets = [0, 8], sizes = [16, 8], strides = [1, 1]} : vector<16x64xf32> to vector<16x8xf32>
    %cst_90 = arith.constant dense<0.000000e+00> : vector<8x8xf32>
    %244 = tpu.matmul %242, %243, %cst_90 {dimension_numbers = #tpu.dot_dimension_numbers<[1], [0], [0], [1], [0, 0, 1, 1], [], []>} : vector<8x16xf32>, vector<16x8xf32>, vector<8x8xf32> -> vector<8x8xf32>
    %245 = vector.extract_strided_slice %211 {offsets = [80, 0], sizes = [8, 16], strides = [1, 1]} : vector<128x16xf32> to vector<8x16xf32>
    %246 = vector.extract_strided_slice %238 {offsets = [0, 16], sizes = [16, 8], strides = [1, 1]} : vector<16x64xf32> to vector<16x8xf32>
    %cst_91 = arith.constant dense<0.000000e+00> : vector<8x8xf32>
    %247 = tpu.matmul %245, %246, %cst_91 {dimension_numbers = #tpu.dot_dimension_numbers<[1], [0], [0], [1], [0, 0, 1, 1], [], []>} : vector<8x16xf32>, vector<16x8xf32>, vector<8x8xf32> -> vector<8x8xf32>
    %248 = vector.extract_strided_slice %211 {offsets = [88, 0], sizes = [8, 16], strides = [1, 1]} : vector<128x16xf32> to vector<8x16xf32>
    %249 = vector.extract_strided_slice %238 {offsets = [0, 24], sizes = [16, 8], strides = [1, 1]} : vector<16x64xf32> to vector<16x8xf32>
    %cst_92 = arith.constant dense<0.000000e+00> : vector<8x8xf32>
    %250 = tpu.matmul %248, %249, %cst_92 {dimension_numbers = #tpu.dot_dimension_numbers<[1], [0], [0], [1], [0, 0, 1, 1], [], []>} : vector<8x16xf32>, vector<16x8xf32>, vector<8x8xf32> -> vector<8x8xf32>
    %251 = vector.extract_strided_slice %211 {offsets = [96, 0], sizes = [8, 16], strides = [1, 1]} : vector<128x16xf32> to vector<8x16xf32>
    %252 = vector.extract_strided_slice %238 {offsets = [0, 32], sizes = [16, 8], strides = [1, 1]} : vector<16x64xf32> to vector<16x8xf32>
    %cst_93 = arith.constant dense<0.000000e+00> : vector<8x8xf32>
    %253 = tpu.matmul %251, %252, %cst_93 {dimension_numbers = #tpu.dot_dimension_numbers<[1], [0], [0], [1], [0, 0, 1, 1], [], []>} : vector<8x16xf32>, vector<16x8xf32>, vector<8x8xf32> -> vector<8x8xf32>
    %254 = vector.extract_strided_slice %211 {offsets = [104, 0], sizes = [8, 16], strides = [1, 1]} : vector<128x16xf32> to vector<8x16xf32>
    %255 = vector.extract_strided_slice %238 {offsets = [0, 40], sizes = [16, 8], strides = [1, 1]} : vector<16x64xf32> to vector<16x8xf32>
    %cst_94 = arith.constant dense<0.000000e+00> : vector<8x8xf32>
    %256 = tpu.matmul %254, %255, %cst_94 {dimension_numbers = #tpu.dot_dimension_numbers<[1], [0], [0], [1], [0, 0, 1, 1], [], []>} : vector<8x16xf32>, vector<16x8xf32>, vector<8x8xf32> -> vector<8x8xf32>
    %257 = vector.extract_strided_slice %211 {offsets = [112, 0], sizes = [8, 16], strides = [1, 1]} : vector<128x16xf32> to vector<8x16xf32>
    %258 = vector.extract_strided_slice %238 {offsets = [0, 48], sizes = [16, 8], strides = [1, 1]} : vector<16x64xf32> to vector<16x8xf32>
    %cst_95 = arith.constant dense<0.000000e+00> : vector<8x8xf32>
    %259 = tpu.matmul %257, %258, %cst_95 {dimension_numbers = #tpu.dot_dimension_numbers<[1], [0], [0], [1], [0, 0, 1, 1], [], []>} : vector<8x16xf32>, vector<16x8xf32>, vector<8x8xf32> -> vector<8x8xf32>
    %260 = vector.extract_strided_slice %211 {offsets = [120, 0], sizes = [8, 16], strides = [1, 1]} : vector<128x16xf32> to vector<8x16xf32>
    %261 = vector.extract_strided_slice %238 {offsets = [0, 56], sizes = [16, 8], strides = [1, 1]} : vector<16x64xf32> to vector<16x8xf32>
    %cst_96 = arith.constant dense<0.000000e+00> : vector<8x8xf32>
    %262 = tpu.matmul %260, %261, %cst_96 {dimension_numbers = #tpu.dot_dimension_numbers<[1], [0], [0], [1], [0, 0, 1, 1], [], []>} : vector<8x16xf32>, vector<16x8xf32>, vector<8x8xf32> -> vector<8x8xf32>
    %263 = tpu.concatenate %241, %244, %247, %250, %253, %256, %259, %262 in 1 : vector<8x8xf32>, vector<8x8xf32>, vector<8x8xf32>, vector<8x8xf32>, vector<8x8xf32>, vector<8x8xf32>, vector<8x8xf32>, vector<8x8xf32> -> vector<8x64xf32>
    %264 = tpu.concatenate %237, %263 in 0 : vector<8x64xf32>, vector<8x64xf32> -> vector<16x64xf32>
    %c3_97 = arith.constant 3 : index
    %c0_98 = arith.constant 0 : index
    %c0_99 = arith.constant 0 : index
    %265 = vector.load %arg7[%c3_97, %c0_98, %c0_99] : memref<4x64x64xf32, #tpu.memory_space<vmem>>, vector<1x64x64xf32>
    %266 = vector.shape_cast %265 : vector<1x64x64xf32> to vector<64x64xf32>
    %cst_100 = arith.constant dense<0.000000e+00> : vector<16x64xf32>
    %267 = tpu.matmul %264, %266, %cst_100 {dimension_numbers = #tpu.dot_dimension_numbers<[1], [0], [0], [1], [0, 0, 1, 1], [], []>} : vector<16x64xf32>, vector<64x64xf32>, vector<16x64xf32> -> vector<16x64xf32>
    %c3_101 = arith.constant 3 : index
    %c0_102 = arith.constant 0 : index
    %c0_103 = arith.constant 0 : index
    %268 = vector.load %arg8[%c3_101, %c0_102, %c0_103] : memref<4x1x64xf32, #tpu.memory_space<vmem>>, vector<1x1x64xf32>
    %269 = vector.shape_cast %268 : vector<1x1x64xf32> to vector<1x64xf32>
    %270 = vector.broadcast %269 : vector<1x64xf32> to vector<16x64xf32>
    %271 = arith.addf %267, %270 : vector<16x64xf32>
    %272 = vector.extract_strided_slice %271 {offsets = [0, 0], sizes = [8, 64], strides = [1, 1]} : vector<16x64xf32> to vector<8x64xf32>
    %c0_104 = arith.constant 0 : index
    %c0_105 = arith.constant 0 : index
    %c0_106 = arith.constant 0 : index
    %273 = vector.load %arg9[%c0_104, %c0_105, %c0_106] : memref<2x8x64xf32, #tpu.memory_space<vmem>>, vector<1x8x64xf32>
    %274 = vector.shape_cast %273 : vector<1x8x64xf32> to vector<8x64xf32>
    %275 = vector.shape_cast %272 : vector<8x64xf32> to vector<1x8x64xf32>
    tpu.vector_store %arg9[%c0_104, %c0_105, %c0_106], %275 {strides = array<i32>} : memref<2x8x64xf32, #tpu.memory_space<vmem>>, vector<1x8x64xf32>,
    %276 = vector.extract_strided_slice %271 {offsets = [8, 0], sizes = [8, 64], strides = [1, 1]} : vector<16x64xf32> to vector<8x64xf32>
    %c1_107 = arith.constant 1 : index
    %c0_108 = arith.constant 0 : index
    %c0_109 = arith.constant 0 : index
    %277 = vector.load %arg9[%c1_107, %c0_108, %c0_109] : memref<2x8x64xf32, #tpu.memory_space<vmem>>, vector<1x8x64xf32>
    %278 = vector.shape_cast %277 : vector<1x8x64xf32> to vector<8x64xf32>
    %279 = vector.shape_cast %276 : vector<8x64xf32> to vector<1x8x64xf32>
    tpu.vector_store %arg9[%c1_107, %c0_108, %c0_109], %279 {strides = array<i32>} : memref<2x8x64xf32, #tpu.memory_space<vmem>>, vector<1x8x64xf32>,
    return
  }
  func.func @transform_0(%arg0: i32, %arg1: memref<8xf32, #tpu.memory_space<smem>>) -> (i32, i32, i32) {
    %c0_i32 = arith.constant 0 : i32
    %c0_i32_0 = arith.constant 0 : i32
    %c0_i32_1 = arith.constant 0 : i32
    return %arg0, %c0_i32, %c0_i32_0 : i32, i32, i32
  }
  func.func @transform_1(%arg0: i32, %arg1: memref<8xf32, #tpu.memory_space<smem>>) -> (i32, i32, i32) {
    %c0_i32 = arith.constant 0 : i32
    %c0_i32_0 = arith.constant 0 : i32
    %c0_i32_1 = arith.constant 0 : i32
    return %arg0, %c0_i32, %c0_i32_0 : i32, i32, i32
  }
  func.func @transform_2(%arg0: i32, %arg1: memref<8xf32, #tpu.memory_space<smem>>) -> (i32, i32, i32) {
    %c0_i32 = arith.constant 0 : i32
    %c0_i32_0 = arith.constant 0 : i32
    %c0_i32_1 = arith.constant 0 : i32
    return %arg0, %c0_i32, %c0_i32_0 : i32, i32, i32
  }
  func.func @transform_3(%arg0: i32, %arg1: memref<8xf32, #tpu.memory_space<smem>>) -> (i32, i32, i32) {
    %c0_i32 = arith.constant 0 : i32
    %c0_i32_0 = arith.constant 0 : i32
    %c0_i32_1 = arith.constant 0 : i32
    return %arg0, %c0_i32, %c0_i32_0 : i32, i32, i32
  }
  func.func @transform_4(%arg0: i32, %arg1: memref<8xf32, #tpu.memory_space<smem>>) -> (i32, i32, i32) {
    %c0_i32 = arith.constant 0 : i32
    %c0_i32_0 = arith.constant 0 : i32
    %c0_i32_1 = arith.constant 0 : i32
    return %arg0, %c0_i32, %c0_i32_0 : i32, i32, i32
  }
  func.func @transform_5(%arg0: i32, %arg1: memref<8xf32, #tpu.memory_space<smem>>) -> (i32, i32, i32) {
    %c0_i32 = arith.constant 0 : i32
    %c0_i32_0 = arith.constant 0 : i32
    %c0_i32_1 = arith.constant 0 : i32
    %c0_i32_2 = arith.constant 0 : i32
    return %c0_i32, %c0_i32_0, %c0_i32_1 : i32, i32, i32
  }
  func.func @transform_6(%arg0: i32, %arg1: memref<8xf32, #tpu.memory_space<smem>>) -> (i32, i32, i32) {
    %c0_i32 = arith.constant 0 : i32
    %c0_i32_0 = arith.constant 0 : i32
    %c0_i32_1 = arith.constant 0 : i32
    %c0_i32_2 = arith.constant 0 : i32
    return %c0_i32, %c0_i32_0, %c0_i32_1 : i32, i32, i32
  }
  func.func @transform_7(%arg0: i32, %arg1: memref<8xf32, #tpu.memory_space<smem>>) -> (i32, i32, i32) {
    %c0_i32 = arith.constant 0 : i32
    %c0_i32_0 = arith.constant 0 : i32
    %c0_i32_1 = arith.constant 0 : i32
    return %arg0, %c0_i32, %c0_i32_0 : i32, i32, i32
  }
}

</mosaic_0001>

<llo_original>
// kernel: soft_masked_attention.1
$region0: #{soft_masked_attention.1}
  #allocation0 [shape = 'u32[]', space=smem, size = 0x4, offset = 0x4, fixed_abs, tag = 'smem constant byte address 0x4 - core index']
  #allocation1 [shape = 'u32[72,128]{1,0:T(1,128)}', space=vmem, size = 0x9000, scoped, tag = 'internal scratch']
  #allocation2 [shape = 's32[1]{0}', space=sflag, size = 0x4, scoped, tag = 'scoped memory for soft_masked_attention.1']
  #allocation3 [shape = 'u8[512]{0}', space=smem, size = 0x200, scoped, tag = 'prefetched SMEM operand 0']
  %s0 = inlined_call_operand.vmem [shape: f32[8], index: 0, kind: input, shape index: {}]
  %s1 = inlined_call_operand.hbm [shape: f32[2,8,64], index: 1, kind: input, shape index: {}]
  %s2 = inlined_call_operand.hbm [shape: f32[2,16,64], index: 2, kind: input, shape index: {}]
  %s3 = inlined_call_operand.hbm [shape: f32[2,16,64], index: 3, kind: input, shape index: {}]
  %s4 = inlined_call_operand.hbm [shape: f32[2,8,16], index: 4, kind: input, shape index: {}]
  %s5 = inlined_call_operand.vmem [shape: f32[2,1,16], index: 5, kind: input, shape index: {}]
  %s6 = inlined_call_operand.hbm [shape: f32[4,64,64], index: 6, kind: input, shape index: {}]
  %s7 = inlined_call_operand.vmem [shape: f32[4,1,64], index: 7, kind: input, shape index: {}]
  %s8 = inlined_call_operand.hbm [shape: f32[2,8,64], index: 8, kind: output, shape index: {}]
  %s9 = sld [smem:[#allocation0]]
  $region58: #{soft_masked_attention.1} parent=0
    _
  %s11 = ssub.s32 1, %s9
  %s12 = scalar_select 0, %s11, %s9
  %s14 = sshll.u32 %s0, 4
  %s15 = int_to_ptr.vmem [resolvable:$true] %s14
  %17 = dma.vmem_to_smem %s15, 16, [#allocation3], [#allocation2]
  %19 = dma.done [#allocation2], 16
  %20 = sfence
  $region1: #{soft_masked_attention.1} parent=0
    #allocation4 [shape = 'u8[8192]{0}', space=vmem, size = 0x2000, scoped, tag = 'input window, operand 1, single buffered']
    #allocation5 [shape = 's32[1]{0}', space=sflag, size = 0x4, scoped, tag = 'scoped memory for soft_masked_attention.1']
    #allocation6 [shape = 's32[1]{0}', space=sflag, size = 0x4, scoped, tag = 'scoped memory for soft_masked_attention.1']
    #allocation7 [shape = 'u8[16384]{0}', space=vmem, size = 0x4000, scoped, tag = 'input window, operand 2, single buffered']
    #allocation8 [shape = 's32[1]{0}', space=sflag, size = 0x4, scoped, tag = 'scoped memory for soft_masked_attention.1']
    #allocation9 [shape = 'u8[16384]{0}', space=vmem, size = 0x4000, scoped, tag = 'input window, operand 3, single buffered']
    #allocation10 [shape = 'u8[8192]{0}', space=vmem, size = 0x2000, scoped, tag = 'input window, operand 4, single buffered']
    #allocation11 [shape = 's32[1]{0}', space=sflag, size = 0x4, scoped, tag = 'scoped memory for soft_masked_attention.1']
    #allocation12 [shape = 'u8[131072]{0}', space=vmem, size = 0x20000, scoped, tag = 'input window, operand 6, single buffered']
    #allocation13 [shape = 'u8[8192]{0}', space=vmem, size = 0x2000, scoped, tag = 'output window, operand 0, single buffered']
    %21 = vsyncpa [#allocation5], 0
    %22 = vsyncpa [#allocation8], 0
    %23 = vsyncpa [#allocation11], 0
    %24 = vsyncpa [#allocation6], 0
    // Predicated region
    $region2: #{soft_masked_attention.1} parent=1 // pred_check
      _
    $region3: #{soft_masked_attention.1} parent=1 // pred_check_branch
      %26 = sbr.rel (0) target = $region5
    $region4: #{soft_masked_attention.1} parent=1 // pred_region
      %28 = vsyncadd [#allocation5], 0
      %s29 = sshll.u32 %s1, 4
      %s30 = int_to_ptr.hbm [resolvable:$true] %s29
      %s31 = sshll.u32 [#allocation4], 4
      %s32 = int_to_ptr.vmem [resolvable:$true] %s31
      %37 = dma.hbm_to_vmem [thread:$0]  %s30, 256, %s32, [#allocation5], 128, 128, 8
    $region5: #{soft_masked_attention.1} parent=1 // pred_fallthru
      _
    // Predicated region
    $region6: #{soft_masked_attention.1} parent=1 // pred_check
      _
    $region7: #{soft_masked_attention.1} parent=1 // pred_check_branch
      %39 = sbr.rel (0) target = $region9
    $region8: #{soft_masked_attention.1} parent=1 // pred_region
      %41 = vsyncadd [#allocation8], 0
      %s42 = sshll.u32 %s2, 4
      %s43 = int_to_ptr.hbm [resolvable:$true] %s42
      %s44 = sshll.u32 [#allocation7], 4
      %s45 = int_to_ptr.vmem [resolvable:$true] %s44
      %50 = dma.hbm_to_vmem [thread:$0]  %s43, 512, %s45, [#allocation8], 128, 128, 8
    $region9: #{soft_masked_attention.1} parent=1 // pred_fallthru
      _
    // Predicated region
    $region10: #{soft_masked_attention.1} parent=1 // pred_check
      _
    $region11: #{soft_masked_attention.1} parent=1 // pred_check_branch
      %52 = sbr.rel (0) target = $region13
    $region12: #{soft_masked_attention.1} parent=1 // pred_region
      %54 = vsyncadd [#allocation8], 0
      %s55 = sshll.u32 %s3, 4
      %s56 = int_to_ptr.hbm [resolvable:$true] %s55
      %s57 = sshll.u32 [#allocation9], 4
      %s58 = int_to_ptr.vmem [resolvable:$true] %s57
      %63 = dma.hbm_to_vmem [thread:$0]  %s56, 512, %s58, [#allocation8], 128, 128, 8
    $region13: #{soft_masked_attention.1} parent=1 // pred_fallthru
      _
    // Predicated region
    $region14: #{soft_masked_attention.1} parent=1 // pred_check
      _
    $region15: #{soft_masked_attention.1} parent=1 // pred_check_branch
      %65 = sbr.rel (0) target = $region17
    $region16: #{soft_masked_attention.1} parent=1 // pred_region
      %67 = vsyncadd [#allocation11], 0
      %s68 = sshll.u32 %s4, 4
      %s69 = int_to_ptr.hbm [resolvable:$true] %s68
      %s70 = sshll.u32 [#allocation10], 4
      %s71 = int_to_ptr.vmem [resolvable:$true] %s70
      %76 = dma.hbm_to_vmem [thread:$0]  %s69, 256, %s71, [#allocation11], 128, 128, 8
    $region17: #{soft_masked_attention.1} parent=1 // pred_fallthru
      _
    // Predicated region
    $region18: #{soft_masked_attention.1} parent=1 // pred_check
      _
    $region19: #{soft_masked_attention.1} parent=1 // pred_check_branch
      %78 = sbr.rel (0) target = $region21
    $region20: #{soft_masked_attention.1} parent=1 // pred_region
      _
    $region21: #{soft_masked_attention.1} parent=1 // pred_fallthru
      _
    // Predicated region
    $region22: #{soft_masked_attention.1} parent=1 // pred_check
      _
    $region23: #{soft_masked_attention.1} parent=1 // pred_check_branch
      %80 = sbr.rel (0) target = $region25
    $region24: #{soft_masked_attention.1} parent=1 // pred_region
      %82 = vsyncadd [#allocation11], 0
      %s83 = sshll.u32 %s6, 4
      %s84 = int_to_ptr.hbm [resolvable:$true] %s83
      %s85 = sshll.u32 [#allocation12], 4
      %s86 = int_to_ptr.vmem [resolvable:$true] %s85
      %91 = dma.hbm_to_vmem [thread:$0]  %s84, 4096, %s86, [#allocation11], 128, 128, 8
    $region25: #{soft_masked_attention.1} parent=1 // pred_fallthru
      _
    // Predicated region
    $region26: #{soft_masked_attention.1} parent=1 // pred_check
      _
    $region27: #{soft_masked_attention.1} parent=1 // pred_check_branch
      %93 = sbr.rel (0) target = $region29
    $region28: #{soft_masked_attention.1} parent=1 // pred_region
      _
    $region29: #{soft_masked_attention.1} parent=1 // pred_fallthru
      _
    // Predicated region
    $region30: #{soft_masked_attention.1} parent=1 // pred_check
      _
    $region31: #{soft_masked_attention.1} parent=1 // pred_check_branch
      %95 = sbr.rel (0) target = $region33
    $region32: #{soft_masked_attention.1} parent=1 // pred_region
      %97 = dma.done [#allocation5], 256
    $region33: #{soft_masked_attention.1} parent=1 // pred_fallthru
      _
    // Predicated region
    $region34: #{soft_masked_attention.1} parent=1 // pred_check
      _
    $region35: #{soft_masked_attention.1} parent=1 // pred_check_branch
      %99 = sbr.rel (0) target = $region37
    $region36: #{soft_masked_attention.1} parent=1 // pred_region
      %101 = dma.done [#allocation8], 512
    $region37: #{soft_masked_attention.1} parent=1 // pred_fallthru
      _
    // Predicated region
    $region38: #{soft_masked_attention.1} parent=1 // pred_check
      _
    $region39: #{soft_masked_attention.1} parent=1 // pred_check_branch
      %103 = sbr.rel (0) target = $region41
    $region40: #{soft_masked_attention.1} parent=1 // pred_region
      %105 = dma.done [#allocation8], 512
    $region41: #{soft_masked_attention.1} parent=1 // pred_fallthru
      _
    // Predicated region
    $region42: #{soft_masked_attention.1} parent=1 // pred_check
      _
    $region43: #{soft_masked_attention.1} parent=1 // pred_check_branch
      %107 = sbr.rel (0) target = $region45
    $region44: #{soft_masked_attention.1} parent=1 // pred_region
      %109 = dma.done [#allocation11], 256
    $region45: #{soft_masked_attention.1} parent=1 // pred_fallthru
      _
    // Predicated region
    $region46: #{soft_masked_attention.1} parent=1 // pred_check
      _
    $region47: #{soft_masked_attention.1} parent=1 // pred_check_branch
      %111 = sbr.rel (0) target = $region49
    $region48: #{soft_masked_attention.1} parent=1 // pred_region
      %113 = dma.done [#allocation11], 4096
    $region49: #{soft_masked_attention.1} parent=1 // pred_fallthru
      _
    %v114 = vld [vmem:[#allocation4] sm:$0xff]
    %s115 = scalar_lea.vmem [#allocation4], 8
    %v116 = vld [vmem:[%s115] sm:$0xff]
    %v117 = vld [vmem:[#allocation7] sm:$0xff]
    %v118 = vld [vmem:[#allocation7 + $0x8] sm:$0xff]
    %s119 = scalar_lea.vmem [#allocation7], 16
    %v120 = vld [vmem:[%s119] sm:$0xff]
    %v121 = vld [vmem:[%s119 + $0x8] sm:$0xff]
    %v122 = vld [vmem:[#allocation9] sm:$0xff]
    %v123 = vld [vmem:[#allocation9 + $0x8] sm:$0xff]
    %s124 = scalar_lea.vmem [#allocation9], 16
    %v125 = vld [vmem:[%s124] sm:$0xff]
    %v126 = vld [vmem:[%s124 + $0x8] sm:$0xff]
    %v127 = vld [vmem:[#allocation12] sm:$0xff]
    %v128 = vld [vmem:[#allocation12 + $0x8] sm:$0xff]
    %v129 = vld [vmem:[#allocation12 + $0x10] sm:$0xff]
    %v130 = vld [vmem:[#allocation12 + $0x18] sm:$0xff]
    %v131 = vld [vmem:[#allocation12 + $0x20] sm:$0xff]
    %v132 = vld [vmem:[#allocation12 + $0x28] sm:$0xff]
    %v133 = vld [vmem:[#allocation12 + $0x30] sm:$0xff]
    %v134 = vld [vmem:[#allocation12 + $0x38] sm:$0xff]
    %v135 = vld [vmem:[%s7] sm:$0x1]
    %v137 = vperm.slane %v135, 0
    %vm139 = vcmask 523264
    %v141 = vsel %vm139, %v114, 0
    %v144 = vsel %vm139, %v116, 0
    %146 = vmatpush.msra.mxu0 0.0
    %147 = vmatpush.msra.mxu0 0.0
    %148 = vmatpush.msra.mxu0 0.0
    %149 = vmatpush.msra.mxu0 0.0
    %150 = vmatpush.msra.mxu0 0.0
    %151 = vmatpush.msra.mxu0 0.0
    %152 = vmatpush.msra.mxu0 0.0
    %153 = vmatpush.msra.mxu0 0.0
    %154 = vmatpush.msra.mxu0 %v134
    %155 = vmatpush.msra.mxu0 %v133
    %156 = vmatpush.msra.mxu0 %v132
    %157 = vmatpush.msra.mxu0 %v131
    %158 = vmatpush.msra.mxu0 %v130
    %159 = vmatpush.msra.mxu0 %v129
    %160 = vmatpush.msra.mxu0 %v128
    %161 = vmatpush.msra.mxu0 %v127
    %162 = vmatmul.f32.gmra.mxu0 %v141
    %v163 = vpop.f32.mrf.mxu0
    %v164 = vadd.f32 %v137, %v163
    %165 = vmatmul.f32.gmra.mxu0 %v144
    %v166 = vpop.f32.mrf.mxu0
    %v167 = vadd.f32 %v137, %v166
    %168 = vdwg.mxu0
    %v169 = vmul.f32 %v164, 0.35355338
    %v170 = vmul.f32 %v167, 0.35355338
    %s171 = scalar_lea.vmem [#allocation12], 64
    %v172 = vld [vmem:[%s171] sm:$0xff]
    %v173 = vld [vmem:[%s171 + $0x8] sm:$0xff]
    %v174 = vld [vmem:[%s171 + $0x10] sm:$0xff]
    %v175 = vld [vmem:[%s171 + $0x18] sm:$0xff]
    %v176 = vld [vmem:[%s171 + $0x20] sm:$0xff]
    %v177 = vld [vmem:[%s171 + $0x28] sm:$0xff]
    %v178 = vld [vmem:[%s171 + $0x30] sm:$0xff]
    %v179 = vld [vmem:[%s171 + $0x38] sm:$0xff]
    %s180 = scalar_lea.vmem %s7, 1
    %v181 = vld [vmem:[%s180] sm:$0x1]
    %v183 = vperm.slane %v181, 0
    %v186 = vsel %vm139, %v117, 0
    %v189 = vsel %vm139, %v118, 0
    %v192 = vsel %vm139, %v120, 0
    %v195 = vsel %vm139, %v121, 0
    %197 = vmatpush.msra.mxu0 0.0
    %198 = vmatpush.msra.mxu0 0.0
    %199 = vmatpush.msra.mxu0 0.0
    %200 = vmatpush.msra.mxu0 0.0
    %201 = vmatpush.msra.mxu0 0.0
    %202 = vmatpush.msra.mxu0 0.0
    %203 = vmatpush.msra.mxu0 0.0
    %204 = vmatpush.msra.mxu0 0.0
    %205 = vmatpush.msra.mxu0 %v179
    %206 = vmatpush.msra.mxu0 %v178
    %207 = vmatpush.msra.mxu0 %v177
    %208 = vmatpush.msra.mxu0 %v176
    %209 = vmatpush.msra.mxu0 %v175
    %210 = vmatpush.msra.mxu0 %v174
    %211 = vmatpush.msra.mxu0 %v173
    %212 = vmatpush.msra.mxu0 %v172
    %213 = vmatmul.f32.gmra.mxu0 %v186
    %v214 = vpop.f32.mrf.mxu0
    %v215 = vadd.f32 %v183, %v214
    %216 = vmatmul.f32.gmra.mxu0 %v189
    %v217 = vpop.f32.mrf.mxu0
    %v218 = vadd.f32 %v183, %v217
    %219 = vmatmul.f32.gmra.mxu0 %v192
    %v220 = vpop.f32.mrf.mxu0
    %v221 = vadd.f32 %v183, %v220
    %222 = vmatmul.f32.gmra.mxu0 %v195
    %v223 = vpop.f32.mrf.mxu0
    %v224 = vadd.f32 %v183, %v223
    %225 = vdwg.mxu0
    %s226 = scalar_lea.vmem [#allocation12], 128
    %v227 = vld [vmem:[%s226] sm:$0xff]
    %v228 = vld [vmem:[%s226 + $0x8] sm:$0xff]
    %v229 = vld [vmem:[%s226 + $0x10] sm:$0xff]
    %v230 = vld [vmem:[%s226 + $0x18] sm:$0xff]
    %v231 = vld [vmem:[%s226 + $0x20] sm:$0xff]
    %v232 = vld [vmem:[%s226 + $0x28] sm:$0xff]
    %v233 = vld [vmem:[%s226 + $0x30] sm:$0xff]
    %v234 = vld [vmem:[%s226 + $0x38] sm:$0xff]
    %s235 = scalar_lea.vmem %s7, 2
    %v236 = vld [vmem:[%s235] sm:$0x1]
    %v238 = vperm.slane %v236, 0
    %v241 = vsel %vm139, %v122, 0
    %v244 = vsel %vm139, %v123, 0
    %v247 = vsel %vm139, %v125, 0
    %v250 = vsel %vm139, %v126, 0
    %252 = vmatpush.msra.mxu0 0.0
    %253 = vmatpush.msra.mxu0 0.0
    %254 = vmatpush.msra.mxu0 0.0
    %255 = vmatpush.msra.mxu0 0.0
    %256 = vmatpush.msra.mxu0 0.0
    %257 = vmatpush.msra.mxu0 0.0
    %258 = vmatpush.msra.mxu0 0.0
    %259 = vmatpush.msra.mxu0 0.0
    %260 = vmatpush.msra.mxu0 %v234
    %261 = vmatpush.msra.mxu0 %v233
    %262 = vmatpush.msra.mxu0 %v232
    %263 = vmatpush.msra.mxu0 %v231
    %264 = vmatpush.msra.mxu0 %v230
    %265 = vmatpush.msra.mxu0 %v229
    %266 = vmatpush.msra.mxu0 %v228
    %267 = vmatpush.msra.mxu0 %v227
    %268 = vmatmul.f32.gmra.mxu0 %v241
    %v269 = vpop.f32.mrf.mxu0
    %v270 = vadd.f32 %v238, %v269
    %271 = vmatmul.f32.gmra.mxu0 %v244
    %v272 = vpop.f32.mrf.mxu0
    %v273 = vadd.f32 %v238, %v272
    %274 = vmatmul.f32.gmra.mxu0 %v247
    %v275 = vpop.f32.mrf.mxu0
    %v276 = vadd.f32 %v238, %v275
    %277 = vmatmul.f32.gmra.mxu0 %v250
    %v278 = vpop.f32.mrf.mxu0
    %v279 = vadd.f32 %v238, %v278
    %280 = vdwg.mxu0
    %v281 = vld [vmem:[#allocation10] sm:$0xff]
    %v282 = vsub.f32 1.0, %v281
    %v283 = vld [vmem:[%s5] sm:$0x1]
    %v284 = vmul.f32 %v283, 1e+30
    %vm285 = vcmask 64512
    %v287 = vsel %vm285, %v169, 0
    %v290 = vsel %vm285, %v215, 0
    %v293 = vsel %vm285, %v218, 0
    %295 = vmatpush.xpose.msra.mxu0 0.0
    %296 = vmatpush.xpose.msra.mxu0 0.0
    %297 = vmatpush.xpose.msra.mxu0 0.0
    %298 = vmatpush.xpose.msra.mxu0 0.0
    %299 = vmatpush.xpose.msra.mxu0 0.0
    %300 = vmatpush.xpose.msra.mxu0 0.0
    %301 = vmatpush.xpose.msra.mxu0 0.0
    %302 = vmatpush.xpose.msra.mxu0 0.0
    %303 = vmatpush.xpose.msra.mxu0 0.0
    %304 = vmatpush.xpose.msra.mxu0 0.0
    %305 = vmatpush.xpose.msra.mxu0 0.0
    %306 = vmatpush.xpose.msra.mxu0 0.0
    %307 = vmatpush.xpose.msra.mxu0 0.0
    %308 = vmatpush.xpose.msra.mxu0 0.0
    %309 = vmatpush.xpose.msra.mxu0 %v293
    %310 = vmatpush.xpose.msra.mxu0 %v290
    %311 = vmatmul.f32.gmra.mxu0 %v287
    %v312 = vpop.f32.mrf.mxu0
    %v313 = vadd.f32 0.0, %v312
    %314 = vdwg.mxu0
    %s315 = sld [smem:[#allocation3]]
    %v316 = vstv %s315
    %v317 = vmul.f32 %v316, %v282
    %v318 = vsub.f32 %v313, %v317
    %v320 = vperm.slane %v284, 0
    %v322 = vsub.f32 %v318, %v320
    %323 = vrot.lane.b32.xlu0 %v169, 120
    %v324 = vpop.permute.xlu0 %323
    %325 = vrot.lane.b32.xlu0 %v215, 120
    %v326 = vpop.permute.xlu0 %325
    %327 = vrot.lane.b32.xlu0 %v218, 120
    %v328 = vpop.permute.xlu0 %327
    %v329 = vsel %vm285, %v324, 0
    %v331 = vsel %vm285, %v326, 0
    %v333 = vsel %vm285, %v328, 0
    %335 = vmatpush.xpose.msra.mxu0 0.0
    %336 = vmatpush.xpose.msra.mxu0 0.0
    %337 = vmatpush.xpose.msra.mxu0 0.0
    %338 = vmatpush.xpose.msra.mxu0 0.0
    %339 = vmatpush.xpose.msra.mxu0 0.0
    %340 = vmatpush.xpose.msra.mxu0 0.0
    %341 = vmatpush.xpose.msra.mxu0 0.0
    %342 = vmatpush.xpose.msra.mxu0 0.0
    %343 = vmatpush.xpose.msra.mxu0 0.0
    %344 = vmatpush.xpose.msra.mxu0 0.0
    %345 = vmatpush.xpose.msra.mxu0 0.0
    %346 = vmatpush.xpose.msra.mxu0 0.0
    %347 = vmatpush.xpose.msra.mxu0 0.0
    %348 = vmatpush.xpose.msra.mxu0 0.0
    %349 = vmatpush.xpose.msra.mxu0 %v333
    %350 = vmatpush.xpose.msra.mxu0 %v331
    %351 = vmatmul.f32.gmra.mxu0 %v329
    %v352 = vpop.f32.mrf.mxu0
    %v353 = vadd.f32 0.0, %v352
    %354 = vdwg.mxu0
    %s355 = sld [smem:[#allocation3 + $0x1]]
    %v356 = vstv %s355
    %v357 = vmul.f32 %v356, %v282
    %v358 = vsub.f32 %v353, %v357
    %v359 = vsub.f32 %v358, %v320
    %360 = vrot.lane.b32.xlu0 %v169, 112
    %v361 = vpop.permute.xlu0 %360
    %362 = vrot.lane.b32.xlu0 %v215, 112
    %v363 = vpop.permute.xlu0 %362
    %364 = vrot.lane.b32.xlu0 %v218, 112
    %v365 = vpop.permute.xlu0 %364
    %v366 = vsel %vm285, %v361, 0
    %v368 = vsel %vm285, %v363, 0
    %v370 = vsel %vm285, %v365, 0
    %372 = vmatpush.xpose.msra.mxu0 0.0
    %373 = vmatpush.xpose.msra.mxu0 0.0
    %374 = vmatpush.xpose.msra.mxu0 0.0
    %375 = vmatpush.xpose.msra.mxu0 0.0
    %376 = vmatpush.xpose.msra.mxu0 0.0
    %377 = vmatpush.xpose.msra.mxu0 0.0
    %378 = vmatpush.xpose.msra.mxu0 0.0
    %379 = vmatpush.xpose.msra.mxu0 0.0
    %380 = vmatpush.xpose.msra.mxu0 0.0
    %381 = vmatpush.xpose.msra.mxu0 0.0
    %382 = vmatpush.xpose.msra.mxu0 0.0
    %383 = vmatpush.xpose.msra.mxu0 0.0
    %384 = vmatpush.xpose.msra.mxu0 0.0
    %385 = vmatpush.xpose.msra.mxu0 0.0
    %386 = vmatpush.xpose.msra.mxu0 %v370
    %387 = vmatpush.xpose.msra.mxu0 %v368
    %388 = vmatmul.f32.gmra.mxu0 %v366
    %v389 = vpop.f32.mrf.mxu0
    %v390 = vadd.f32 0.0, %v389
    %391 = vdwg.mxu0
    %s392 = sld [smem:[#allocation3 + $0x2]]
    %v393 = vstv %s392
    %v394 = vmul.f32 %v393, %v282
    %v395 = vsub.f32 %v390, %v394
    %v396 = vsub.f32 %v395, %v320
    %397 = vrot.lane.b32.xlu0 %v169, 104
    %v398 = vpop.permute.xlu0 %397
    %399 = vrot.lane.b32.xlu0 %v215, 104
    %v400 = vpop.permute.xlu0 %399
    %401 = vrot.lane.b32.xlu0 %v218, 104
    %v402 = vpop.permute.xlu0 %401
    %v403 = vsel %vm285, %v398, 0
    %v405 = vsel %vm285, %v400, 0
    %v407 = vsel %vm285, %v402, 0
    %409 = vmatpush.xpose.msra.mxu0 0.0
    %410 = vmatpush.xpose.msra.mxu0 0.0
    %411 = vmatpush.xpose.msra.mxu0 0.0
    %412 = vmatpush.xpose.msra.mxu0 0.0
    %413 = vmatpush.xpose.msra.mxu0 0.0
    %414 = vmatpush.xpose.msra.mxu0 0.0
    %415 = vmatpush.xpose.msra.mxu0 0.0
    %416 = vmatpush.xpose.msra.mxu0 0.0
    %417 = vmatpush.xpose.msra.mxu0 0.0
    %418 = vmatpush.xpose.msra.mxu0 0.0
    %419 = vmatpush.xpose.msra.mxu0 0.0
    %420 = vmatpush.xpose.msra.mxu0 0.0
    %421 = vmatpush.xpose.msra.mxu0 0.0
    %422 = vmatpush.xpose.msra.mxu0 0.0
    %423 = vmatpush.xpose.msra.mxu0 %v407
    %424 = vmatpush.xpose.msra.mxu0 %v405
    %425 = vmatmul.f32.gmra.mxu0 %v403
    %v426 = vpop.f32.mrf.mxu0
    %v427 = vadd.f32 0.0, %v426
    %428 = vdwg.mxu0
    %s429 = sld [smem:[#allocation3 + $0x3]]
    %v430 = vstv %s429
    %v431 = vmul.f32 %v430, %v282
    %v432 = vsub.f32 %v427, %v431
    %v433 = vsub.f32 %v432, %v320
    %434 = vrot.lane.b32.xlu0 %v169, 96
    %v435 = vpop.permute.xlu0 %434
    %436 = vrot.lane.b32.xlu0 %v215, 96
    %v437 = vpop.permute.xlu0 %436
    %438 = vrot.lane.b32.xlu0 %v218, 96
    %v439 = vpop.permute.xlu0 %438
    %v440 = vsel %vm285, %v435, 0
    %v442 = vsel %vm285, %v437, 0
    %v444 = vsel %vm285, %v439, 0
    %446 = vmatpush.xpose.msra.mxu0 0.0
    %447 = vmatpush.xpose.msra.mxu0 0.0
    %448 = vmatpush.xpose.msra.mxu0 0.0
    %449 = vmatpush.xpose.msra.mxu0 0.0
    %450 = vmatpush.xpose.msra.mxu0 0.0
    %451 = vmatpush.xpose.msra.mxu0 0.0
    %452 = vmatpush.xpose.msra.mxu0 0.0
    %453 = vmatpush.xpose.msra.mxu0 0.0
    %454 = vmatpush.xpose.msra.mxu0 0.0
    %455 = vmatpush.xpose.msra.mxu0 0.0
    %456 = vmatpush.xpose.msra.mxu0 0.0
    %457 = vmatpush.xpose.msra.mxu0 0.0
    %458 = vmatpush.xpose.msra.mxu0 0.0
    %459 = vmatpush.xpose.msra.mxu0 0.0
    %460 = vmatpush.xpose.msra.mxu0 %v444
    %461 = vmatpush.xpose.msra.mxu0 %v442
    %462 = vmatmul.f32.gmra.mxu0 %v440
    %v463 = vpop.f32.mrf.mxu0
    %v464 = vadd.f32 0.0, %v463
    %465 = vdwg.mxu0
    %s466 = sld [smem:[#allocation3 + $0x4]]
    %v467 = vstv %s466
    %v468 = vmul.f32 %v467, %v282
    %v469 = vsub.f32 %v464, %v468
    %v470 = vsub.f32 %v469, %v320
    %471 = vrot.lane.b32.xlu0 %v169, 88
    %v472 = vpop.permute.xlu0 %471
    %473 = vrot.lane.b32.xlu0 %v215, 88
    %v474 = vpop.permute.xlu0 %473
    %475 = vrot.lane.b32.xlu0 %v218, 88
    %v476 = vpop.permute.xlu0 %475
    %v477 = vsel %vm285, %v472, 0
    %v479 = vsel %vm285, %v474, 0
    %v481 = vsel %vm285, %v476, 0
    %483 = vmatpush.xpose.msra.mxu0 0.0
    %484 = vmatpush.xpose.msra.mxu0 0.0
    %485 = vmatpush.xpose.msra.mxu0 0.0
    %486 = vmatpush.xpose.msra.mxu0 0.0
    %487 = vmatpush.xpose.msra.mxu0 0.0
    %488 = vmatpush.xpose.msra.mxu0 0.0
    %489 = vmatpush.xpose.msra.mxu0 0.0
    %490 = vmatpush.xpose.msra.mxu0 0.0
    %491 = vmatpush.xpose.msra.mxu0 0.0
    %492 = vmatpush.xpose.msra.mxu0 0.0
    %493 = vmatpush.xpose.msra.mxu0 0.0
    %494 = vmatpush.xpose.msra.mxu0 0.0
    %495 = vmatpush.xpose.msra.mxu0 0.0
    %496 = vmatpush.xpose.msra.mxu0 0.0
    %497 = vmatpush.xpose.msra.mxu0 %v481
    %498 = vmatpush.xpose.msra.mxu0 %v479
    %499 = vmatmul.f32.gmra.mxu0 %v477
    %v500 = vpop.f32.mrf.mxu0
    %v501 = vadd.f32 0.0, %v500
    %502 = vdwg.mxu0
    %s503 = sld [smem:[#allocation3 + $0x5]]
    %v504 = vstv %s503
    %v505 = vmul.f32 %v504, %v282
    %v506 = vsub.f32 %v501, %v505
    %v507 = vsub.f32 %v506, %v320
    %508 = vrot.lane.b32.xlu0 %v169, 80
    %v509 = vpop.permute.xlu0 %508
    %510 = vrot.lane.b32.xlu0 %v215, 80
    %v511 = vpop.permute.xlu0 %510
    %512 = vrot.lane.b32.xlu0 %v218, 80
    %v513 = vpop.permute.xlu0 %512
    %v514 = vsel %vm285, %v509, 0
    %v516 = vsel %vm285, %v511, 0
    %v518 = vsel %vm285, %v513, 0
    %520 = vmatpush.xpose.msra.mxu0 0.0
    %521 = vmatpush.xpose.msra.mxu0 0.0
    %522 = vmatpush.xpose.msra.mxu0 0.0
    %523 = vmatpush.xpose.msra.mxu0 0.0
    %524 = vmatpush.xpose.msra.mxu0 0.0
    %525 = vmatpush.xpose.msra.mxu0 0.0
    %526 = vmatpush.xpose.msra.mxu0 0.0
    %527 = vmatpush.xpose.msra.mxu0 0.0
    %528 = vmatpush.xpose.msra.mxu0 0.0
    %529 = vmatpush.xpose.msra.mxu0 0.0
    %530 = vmatpush.xpose.msra.mxu0 0.0
    %531 = vmatpush.xpose.msra.mxu0 0.0
    %532 = vmatpush.xpose.msra.mxu0 0.0
    %533 = vmatpush.xpose.msra.mxu0 0.0
    %534 = vmatpush.xpose.msra.mxu0 %v518
    %535 = vmatpush.xpose.msra.mxu0 %v516
    %536 = vmatmul.f32.gmra.mxu0 %v514
    %v537 = vpop.f32.mrf.mxu0
    %v538 = vadd.f32 0.0, %v537
    %539 = vdwg.mxu0
    %s540 = sld [smem:[#allocation3 + $0x6]]
    %v541 = vstv %s540
    %v542 = vmul.f32 %v541, %v282
    %v543 = vsub.f32 %v538, %v542
    %v544 = vsub.f32 %v543, %v320
    %545 = vrot.lane.b32.xlu0 %v169, 72
    %v546 = vpop.permute.xlu0 %545
    %547 = vrot.lane.b32.xlu0 %v215, 72
    %v548 = vpop.permute.xlu0 %547
    %549 = vrot.lane.b32.xlu0 %v218, 72
    %v550 = vpop.permute.xlu0 %549
    %v551 = vsel %vm285, %v546, 0
    %v553 = vsel %vm285, %v548, 0
    %v555 = vsel %vm285, %v550, 0
    %557 = vmatpush.xpose.msra.mxu0 0.0
    %558 = vmatpush.xpose.msra.mxu0 0.0
    %559 = vmatpush.xpose.msra.mxu0 0.0
    %560 = vmatpush.xpose.msra.mxu0 0.0
    %561 = vmatpush.xpose.msra.mxu0 0.0
    %562 = vmatpush.xpose.msra.mxu0 0.0
    %563 = vmatpush.xpose.msra.mxu0 0.0
    %564 = vmatpush.xpose.msra.mxu0 0.0
    %565 = vmatpush.xpose.msra.mxu0 0.0
    %566 = vmatpush.xpose.msra.mxu0 0.0
    %567 = vmatpush.xpose.msra.mxu0 0.0
    %568 = vmatpush.xpose.msra.mxu0 0.0
    %569 = vmatpush.xpose.msra.mxu0 0.0
    %570 = vmatpush.xpose.msra.mxu0 0.0
    %571 = vmatpush.xpose.msra.mxu0 %v555
    %572 = vmatpush.xpose.msra.mxu0 %v553
    %573 = vmatmul.f32.gmra.mxu0 %v551
    %v574 = vpop.f32.mrf.mxu0
    %v575 = vadd.f32 0.0, %v574
    %576 = vdwg.mxu0
    %s577 = sld [smem:[#allocation3 + $0x7]]
    %v578 = vstv %s577
    %v579 = vmul.f32 %v578, %v282
    %v580 = vsub.f32 %v575, %v579
    %v581 = vsub.f32 %v580, %v320
    %s582 = scalar_lea.vmem [#allocation10], 8
    %v583 = vld [vmem:[%s582] sm:$0xff]
    %v584 = vsub.f32 1.0, %v583
    %s585 = scalar_lea.vmem %s5, 1
    %v586 = vld [vmem:[%s585] sm:$0x1]
    %v587 = vmul.f32 %v586, 1e+30
    %v589 = vsel %vm285, %v170, 0
    %v592 = vsel %vm285, %v221, 0
    %v595 = vsel %vm285, %v224, 0
    %597 = vmatpush.xpose.msra.mxu0 0.0
    %598 = vmatpush.xpose.msra.mxu0 0.0
    %599 = vmatpush.xpose.msra.mxu0 0.0
    %600 = vmatpush.xpose.msra.mxu0 0.0
    %601 = vmatpush.xpose.msra.mxu0 0.0
    %602 = vmatpush.xpose.msra.mxu0 0.0
    %603 = vmatpush.xpose.msra.mxu0 0.0
    %604 = vmatpush.xpose.msra.mxu0 0.0
    %605 = vmatpush.xpose.msra.mxu0 0.0
    %606 = vmatpush.xpose.msra.mxu0 0.0
    %607 = vmatpush.xpose.msra.mxu0 0.0
    %608 = vmatpush.xpose.msra.mxu0 0.0
    %609 = vmatpush.xpose.msra.mxu0 0.0
    %610 = vmatpush.xpose.msra.mxu0 0.0
    %611 = vmatpush.xpose.msra.mxu0 %v595
    %612 = vmatpush.xpose.msra.mxu0 %v592
    %613 = vmatmul.f32.gmra.mxu0 %v589
    %v614 = vpop.f32.mrf.mxu0
    %v615 = vadd.f32 0.0, %v614
    %616 = vdwg.mxu0
    %v617 = vmul.f32 %v316, %v584
    %v618 = vsub.f32 %v615, %v617
    %v620 = vperm.slane %v587, 0
    %v622 = vsub.f32 %v618, %v620
    %623 = vrot.lane.b32.xlu0 %v170, 120
    %v624 = vpop.permute.xlu0 %623
    %625 = vrot.lane.b32.xlu0 %v221, 120
    %v626 = vpop.permute.xlu0 %625
    %627 = vrot.lane.b32.xlu0 %v224, 120
    %v628 = vpop.permute.xlu0 %627
    %v629 = vsel %vm285, %v624, 0
    %v631 = vsel %vm285, %v626, 0
    %v633 = vsel %vm285, %v628, 0
    %635 = vmatpush.xpose.msra.mxu0 0.0
    %636 = vmatpush.xpose.msra.mxu0 0.0
    %637 = vmatpush.xpose.msra.mxu0 0.0
    %638 = vmatpush.xpose.msra.mxu0 0.0
    %639 = vmatpush.xpose.msra.mxu0 0.0
    %640 = vmatpush.xpose.msra.mxu0 0.0
    %641 = vmatpush.xpose.msra.mxu0 0.0
    %642 = vmatpush.xpose.msra.mxu0 0.0
    %643 = vmatpush.xpose.msra.mxu0 0.0
    %644 = vmatpush.xpose.msra.mxu0 0.0
    %645 = vmatpush.xpose.msra.mxu0 0.0
    %646 = vmatpush.xpose.msra.mxu0 0.0
    %647 = vmatpush.xpose.msra.mxu0 0.0
    %648 = vmatpush.xpose.msra.mxu0 0.0
    %649 = vmatpush.xpose.msra.mxu0 %v633
    %650 = vmatpush.xpose.msra.mxu0 %v631
    %651 = vmatmul.f32.gmra.mxu0 %v629
    %v652 = vpop.f32.mrf.mxu0
    %v653 = vadd.f32 0.0, %v652
    %654 = vdwg.mxu0
    %v655 = vmul.f32 %v356, %v584
    %v656 = vsub.f32 %v653, %v655
    %v657 = vsub.f32 %v656, %v620
    %658 = vrot.lane.b32.xlu0 %v170, 112
    %v659 = vpop.permute.xlu0 %658
    %660 = vrot.lane.b32.xlu0 %v221, 112
    %v661 = vpop.permute.xlu0 %660
    %662 = vrot.lane.b32.xlu0 %v224, 112
    %v663 = vpop.permute.xlu0 %662
    %v664 = vsel %vm285, %v659, 0
    %v666 = vsel %vm285, %v661, 0
    %v668 = vsel %vm285, %v663, 0
    %670 = vmatpush.xpose.msra.mxu0 0.0
    %671 = vmatpush.xpose.msra.mxu0 0.0
    %672 = vmatpush.xpose.msra.mxu0 0.0
    %673 = vmatpush.xpose.msra.mxu0 0.0
    %674 = vmatpush.xpose.msra.mxu0 0.0
    %675 = vmatpush.xpose.msra.mxu0 0.0
    %676 = vmatpush.xpose.msra.mxu0 0.0
    %677 = vmatpush.xpose.msra.mxu0 0.0
    %678 = vmatpush.xpose.msra.mxu0 0.0
    %679 = vmatpush.xpose.msra.mxu0 0.0
    %680 = vmatpush.xpose.msra.mxu0 0.0
    %681 = vmatpush.xpose.msra.mxu0 0.0
    %682 = vmatpush.xpose.msra.mxu0 0.0
    %683 = vmatpush.xpose.msra.mxu0 0.0
    %684 = vmatpush.xpose.msra.mxu0 %v668
    %685 = vmatpush.xpose.msra.mxu0 %v666
    %686 = vmatmul.f32.gmra.mxu0 %v664
    %v687 = vpop.f32.mrf.mxu0
    %v688 = vadd.f32 0.0, %v687
    %689 = vdwg.mxu0
    %v690 = vmul.f32 %v393, %v584
    %v691 = vsub.f32 %v688, %v690
    %v692 = vsub.f32 %v691, %v620
    %693 = vrot.lane.b32.xlu0 %v170, 104
    %v694 = vpop.permute.xlu0 %693
    %695 = vrot.lane.b32.xlu0 %v221, 104
    %v696 = vpop.permute.xlu0 %695
    %697 = vrot.lane.b32.xlu0 %v224, 104
    %v698 = vpop.permute.xlu0 %697
    %v699 = vsel %vm285, %v694, 0
    %v701 = vsel %vm285, %v696, 0
    %v703 = vsel %vm285, %v698, 0
    %705 = vmatpush.xpose.msra.mxu0 0.0
    %706 = vmatpush.xpose.msra.mxu0 0.0
    %707 = vmatpush.xpose.msra.mxu0 0.0
    %708 = vmatpush.xpose.msra.mxu0 0.0
    %709 = vmatpush.xpose.msra.mxu0 0.0
    %710 = vmatpush.xpose.msra.mxu0 0.0
    %711 = vmatpush.xpose.msra.mxu0 0.0
    %712 = vmatpush.xpose.msra.mxu0 0.0
    %713 = vmatpush.xpose.msra.mxu0 0.0
    %714 = vmatpush.xpose.msra.mxu0 0.0
    %715 = vmatpush.xpose.msra.mxu0 0.0
    %716 = vmatpush.xpose.msra.mxu0 0.0
    %717 = vmatpush.xpose.msra.mxu0 0.0
    %718 = vmatpush.xpose.msra.mxu0 0.0
    %719 = vmatpush.xpose.msra.mxu0 %v703
    %720 = vmatpush.xpose.msra.mxu0 %v701
    %721 = vmatmul.f32.gmra.mxu0 %v699
    %v722 = vpop.f32.mrf.mxu0
    %v723 = vadd.f32 0.0, %v722
    %724 = vdwg.mxu0
    %v725 = vmul.f32 %v430, %v584
    %v726 = vsub.f32 %v723, %v725
    %v727 = vsub.f32 %v726, %v620
    %728 = vrot.lane.b32.xlu0 %v170, 96
    %v729 = vpop.permute.xlu0 %728
    %730 = vrot.lane.b32.xlu0 %v221, 96
    %v731 = vpop.permute.xlu0 %730
    %732 = vrot.lane.b32.xlu0 %v224, 96
    %v733 = vpop.permute.xlu0 %732
    %v734 = vsel %vm285, %v729, 0
    %v736 = vsel %vm285, %v731, 0
    %v738 = vsel %vm285, %v733, 0
    %740 = vmatpush.xpose.msra.mxu0 0.0
    %741 = vmatpush.xpose.msra.mxu0 0.0
    %742 = vmatpush.xpose.msra.mxu0 0.0
    %743 = vmatpush.xpose.msra.mxu0 0.0
    %744 = vmatpush.xpose.msra.mxu0 0.0
    %745 = vmatpush.xpose.msra.mxu0 0.0
    %746 = vmatpush.xpose.msra.mxu0 0.0
    %747 = vmatpush.xpose.msra.mxu0 0.0
    %748 = vmatpush.xpose.msra.mxu0 0.0
    %749 = vmatpush.xpose.msra.mxu0 0.0
    %750 = vmatpush.xpose.msra.mxu0 0.0
    %751 = vmatpush.xpose.msra.mxu0 0.0
    %752 = vmatpush.xpose.msra.mxu0 0.0
    %753 = vmatpush.xpose.msra.mxu0 0.0
    %754 = vmatpush.xpose.msra.mxu0 %v738
    %755 = vmatpush.xpose.msra.mxu0 %v736
    %756 = vmatmul.f32.gmra.mxu0 %v734
    %v757 = vpop.f32.mrf.mxu0
    %v758 = vadd.f32 0.0, %v757
    %759 = vdwg.mxu0
    %v760 = vmul.f32 %v467, %v584
    %v761 = vsub.f32 %v758, %v760
    %v762 = vsub.f32 %v761, %v620
    %763 = vrot.lane.b32.xlu0 %v170, 88
    %v764 = vpop.permute.xlu0 %763
    %765 = vrot.lane.b32.xlu0 %v221, 88
    %v766 = vpop.permute.xlu0 %765
    %767 = vrot.lane.b32.xlu0 %v224, 88
    %v768 = vpop.permute.xlu0 %767
    %v769 = vsel %vm285, %v764, 0
    %v771 = vsel %vm285, %v766, 0
    %v773 = vsel %vm285, %v768, 0
    %775 = vmatpush.xpose.msra.mxu0 0.0
    %776 = vmatpush.xpose.msra.mxu0 0.0
    %777 = vmatpush.xpose.msra.mxu0 0.0
    %778 = vmatpush.xpose.msra.mxu0 0.0
    %779 = vmatpush.xpose.msra.mxu0 0.0
    %780 = vmatpush.xpose.msra.mxu0 0.0
    %781 = vmatpush.xpose.msra.mxu0 0.0
    %782 = vmatpush.xpose.msra.mxu0 0.0
    %783 = vmatpush.xpose.msra.mxu0 0.0
    %784 = vmatpush.xpose.msra.mxu0 0.0
    %785 = vmatpush.xpose.msra.mxu0 0.0
    %786 = vmatpush.xpose.msra.mxu0 0.0
    %787 = vmatpush.xpose.msra.mxu0 0.0
    %788 = vmatpush.xpose.msra.mxu0 0.0
    %789 = vmatpush.xpose.msra.mxu0 %v773
    %790 = vmatpush.xpose.msra.mxu0 %v771
    %791 = vmatmul.f32.gmra.mxu0 %v769
    %v792 = vpop.f32.mrf.mxu0
    %v793 = vadd.f32 0.0, %v792
    %794 = vdwg.mxu0
    %v795 = vmul.f32 %v504, %v584
    %v796 = vsub.f32 %v793, %v795
    %v797 = vsub.f32 %v796, %v620
    %798 = vrot.lane.b32.xlu0 %v170, 80
    %v799 = vpop.permute.xlu0 %798
    %800 = vrot.lane.b32.xlu0 %v221, 80
    %v801 = vpop.permute.xlu0 %800
    %802 = vrot.lane.b32.xlu0 %v224, 80
    %v803 = vpop.permute.xlu0 %802
    %v804 = vsel %vm285, %v799, 0
    %v806 = vsel %vm285, %v801, 0
    %v808 = vsel %vm285, %v803, 0
    %810 = vmatpush.xpose.msra.mxu0 0.0
    %811 = vmatpush.xpose.msra.mxu0 0.0
    %812 = vmatpush.xpose.msra.mxu0 0.0
    %813 = vmatpush.xpose.msra.mxu0 0.0
    %814 = vmatpush.xpose.msra.mxu0 0.0
    %815 = vmatpush.xpose.msra.mxu0 0.0
    %816 = vmatpush.xpose.msra.mxu0 0.0
    %817 = vmatpush.xpose.msra.mxu0 0.0
    %818 = vmatpush.xpose.msra.mxu0 0.0
    %819 = vmatpush.xpose.msra.mxu0 0.0
    %820 = vmatpush.xpose.msra.mxu0 0.0
    %821 = vmatpush.xpose.msra.mxu0 0.0
    %822 = vmatpush.xpose.msra.mxu0 0.0
    %823 = vmatpush.xpose.msra.mxu0 0.0
    %824 = vmatpush.xpose.msra.mxu0 %v808
    %825 = vmatpush.xpose.msra.mxu0 %v806
    %826 = vmatmul.f32.gmra.mxu0 %v804
    %v827 = vpop.f32.mrf.mxu0
    %v828 = vadd.f32 0.0, %v827
    %829 = vdwg.mxu0
    %v830 = vmul.f32 %v541, %v584
    %v831 = vsub.f32 %v828, %v830
    %v832 = vsub.f32 %v831, %v620
    %833 = vrot.lane.b32.xlu0 %v170, 72
    %v834 = vpop.permute.xlu0 %833
    %835 = vrot.lane.b32.xlu0 %v221, 72
    %v836 = vpop.permute.xlu0 %835
    %837 = vrot.lane.b32.xlu0 %v224, 72
    %v838 = vpop.permute.xlu0 %837
    %v839 = vsel %vm285, %v834, 0
    %v841 = vsel %vm285, %v836, 0
    %v843 = vsel %vm285, %v838, 0
    %845 = vmatpush.xpose.msra.mxu0 0.0
    %846 = vmatpush.xpose.msra.mxu0 0.0
    %847 = vmatpush.xpose.msra.mxu0 0.0
    %848 = vmatpush.xpose.msra.mxu0 0.0
    %849 = vmatpush.xpose.msra.mxu0 0.0
    %850 = vmatpush.xpose.msra.mxu0 0.0
    %851 = vmatpush.xpose.msra.mxu0 0.0
    %852 = vmatpush.xpose.msra.mxu0 0.0
    %853 = vmatpush.xpose.msra.mxu0 0.0
    %854 = vmatpush.xpose.msra.mxu0 0.0
    %855 = vmatpush.xpose.msra.mxu0 0.0
    %856 = vmatpush.xpose.msra.mxu0 0.0
    %857 = vmatpush.xpose.msra.mxu0 0.0
    %858 = vmatpush.xpose.msra.mxu0 0.0
    %859 = vmatpush.xpose.msra.mxu0 %v843
    %860 = vmatpush.xpose.msra.mxu0 %v841
    %861 = vmatmul.f32.gmra.mxu0 %v839
    %v862 = vpop.f32.mrf.mxu0
    %v863 = vadd.f32 0.0, %v862
    %864 = vdwg.mxu0
    %v865 = vmul.f32 %v578, %v584
    %v866 = vsub.f32 %v863, %v865
    %v867 = vsub.f32 %v866, %v620
    %vm868 = vcmask 130048
    %v869 = vsel %vm868, %v322, -inf
    %870 = vmax.xlane.f32.xlu0 %v869
    %v871 = vpop.xlane.xlu0 %870
    %v872 = vsel %vm868, %v359, -inf
    %873 = vmax.xlane.f32.xlu0 %v872
    %v874 = vpop.xlane.xlu0 %873
    %v875 = vsel %vm868, %v396, -inf
    %876 = vmax.xlane.f32.xlu0 %v875
    %v877 = vpop.xlane.xlu0 %876
    %v878 = vsel %vm868, %v433, -inf
    %879 = vmax.xlane.f32.xlu0 %v878
    %v880 = vpop.xlane.xlu0 %879
    %v881 = vsel %vm868, %v470, -inf
    %882 = vmax.xlane.f32.xlu0 %v881
    %v883 = vpop.xlane.xlu0 %882
    %v884 = vsel %vm868, %v507, -inf
    %885 = vmax.xlane.f32.xlu0 %v884
    %v886 = vpop.xlane.xlu0 %885
    %v887 = vsel %vm868, %v544, -inf
    %888 = vmax.xlane.f32.xlu0 %v887
    %v889 = vpop.xlane.xlu0 %888
    %v890 = vsel %vm868, %v581, -inf
    %891 = vmax.xlane.f32.xlu0 %v890
    %v892 = vpop.xlane.xlu0 %891
    %v893 = vsel %vm868, %v622, -inf
    %894 = vmax.xlane.f32.xlu0 %v893
    %v895 = vpop.xlane.xlu0 %894
    %v896 = vsel %vm868, %v657, -inf
    %897 = vmax.xlane.f32.xlu0 %v896
    %v898 = vpop.xlane.xlu0 %897
    %v899 = vsel %vm868, %v692, -inf
    %900 = vmax.xlane.f32.xlu0 %v899
    %v901 = vpop.xlane.xlu0 %900
    %v902 = vsel %vm868, %v727, -inf
    %903 = vmax.xlane.f32.xlu0 %v902
    %v904 = vpop.xlane.xlu0 %903
    %v905 = vsel %vm868, %v762, -inf
    %906 = vmax.xlane.f32.xlu0 %v905
    %v907 = vpop.xlane.xlu0 %906
    %v908 = vsel %vm868, %v797, -inf
    %909 = vmax.xlane.f32.xlu0 %v908
    %v910 = vpop.xlane.xlu0 %909
    %v911 = vsel %vm868, %v832, -inf
    %912 = vmax.xlane.f32.xlu0 %v911
    %v913 = vpop.xlane.xlu0 %912
    %v914 = vsel %vm868, %v867, -inf
    %915 = vmax.xlane.f32.xlu0 %v914
    %v916 = vpop.xlane.xlu0 %915
    %v917 = vsub.f32 %v322, %v871
    %v918 = vsub.f32 %v359, %v874
    %v919 = vsub.f32 %v396, %v877
    %v920 = vsub.f32 %v433, %v880
    %v921 = vsub.f32 %v470, %v883
    %v922 = vsub.f32 %v507, %v886
    %v923 = vsub.f32 %v544, %v889
    %v924 = vsub.f32 %v581, %v892
    %v925 = vsub.f32 %v622, %v895
    %v926 = vsub.f32 %v657, %v898
    %v927 = vsub.f32 %v692, %v901
    %v928 = vsub.f32 %v727, %v904
    %v929 = vsub.f32 %v762, %v907
    %v930 = vsub.f32 %v797, %v910
    %v931 = vsub.f32 %v832, %v913
    %v932 = vsub.f32 %v867, %v916
    %v933 = vmul.f32 %v917, 1.442695
    %v934 = vpow.pop %v933
    %v935 = vmul.f32 %v918, 1.442695
    %v936 = vpow.pop %v935
    %v937 = vmul.f32 %v919, 1.442695
    %v938 = vpow.pop %v937
    %v939 = vmul.f32 %v920, 1.442695
    %v940 = vpow.pop %v939
    %v941 = vmul.f32 %v921, 1.442695
    %v942 = vpow.pop %v941
    %v943 = vmul.f32 %v922, 1.442695
    %v944 = vpow.pop %v943
    %v945 = vmul.f32 %v923, 1.442695
    %v946 = vpow.pop %v945
    %v947 = vmul.f32 %v924, 1.442695
    %v948 = vpow.pop %v947
    %v949 = vmul.f32 %v925, 1.442695
    %v950 = vpow.pop %v949
    %v951 = vmul.f32 %v926, 1.442695
    %v952 = vpow.pop %v951
    %v953 = vmul.f32 %v927, 1.442695
    %v954 = vpow.pop %v953
    %v955 = vmul.f32 %v928, 1.442695
    %v956 = vpow.pop %v955
    %v957 = vmul.f32 %v929, 1.442695
    %v958 = vpow.pop %v957
    %v959 = vmul.f32 %v930, 1.442695
    %v960 = vpow.pop %v959
    %v961 = vmul.f32 %v931, 1.442695
    %v962 = vpow.pop %v961
    %v963 = vmul.f32 %v932, 1.442695
    %v964 = vpow.pop %v963
    %v965 = vsel %vm868, %v934, 0.0
    %966 = vadd.xlane.f32.xlu0 %v965
    %v967 = vpop.xlane.xlu0 %966
    %v968 = vsel %vm868, %v936, 0.0
    %969 = vadd.xlane.f32.xlu0 %v968
    %v970 = vpop.xlane.xlu0 %969
    %v971 = vsel %vm868, %v938, 0.0
    %972 = vadd.xlane.f32.xlu0 %v971
    %v973 = vpop.xlane.xlu0 %972
    %v974 = vsel %vm868, %v940, 0.0
    %975 = vadd.xlane.f32.xlu0 %v974
    %v976 = vpop.xlane.xlu0 %975
    %v977 = vsel %vm868, %v942, 0.0
    %978 = vadd.xlane.f32.xlu0 %v977
    %v979 = vpop.xlane.xlu0 %978
    %v980 = vsel %vm868, %v944, 0.0
    %981 = vadd.xlane.f32.xlu0 %v980
    %v982 = vpop.xlane.xlu0 %981
    %v983 = vsel %vm868, %v946, 0.0
    %984 = vadd.xlane.f32.xlu0 %v983
    %v985 = vpop.xlane.xlu0 %984
    %v986 = vsel %vm868, %v948, 0.0
    %987 = vadd.xlane.f32.xlu0 %v986
    %v988 = vpop.xlane.xlu0 %987
    %v989 = vsel %vm868, %v950, 0.0
    %990 = vadd.xlane.f32.xlu0 %v989
    %v991 = vpop.xlane.xlu0 %990
    %v992 = vsel %vm868, %v952, 0.0
    %993 = vadd.xlane.f32.xlu0 %v992
    %v994 = vpop.xlane.xlu0 %993
    %v995 = vsel %vm868, %v954, 0.0
    %996 = vadd.xlane.f32.xlu0 %v995
    %v997 = vpop.xlane.xlu0 %996
    %v998 = vsel %vm868, %v956, 0.0
    %999 = vadd.xlane.f32.xlu0 %v998
    %v1000 = vpop.xlane.xlu0 %999
    %v1001 = vsel %vm868, %v958, 0.0
    %1002 = vadd.xlane.f32.xlu0 %v1001
    %v1003 = vpop.xlane.xlu0 %1002
    %v1004 = vsel %vm868, %v960, 0.0
    %1005 = vadd.xlane.f32.xlu0 %v1004
    %v1006 = vpop.xlane.xlu0 %1005
    %v1007 = vsel %vm868, %v962, 0.0
    %1008 = vadd.xlane.f32.xlu0 %v1007
    %v1009 = vpop.xlane.xlu0 %1008
    %v1010 = vsel %vm868, %v964, 0.0
    %1011 = vadd.xlane.f32.xlu0 %v1010
    %v1012 = vpop.xlane.xlu0 %1011
    %v1013 = vrcp.pop %v967
    %v1014 = vmul.f32 %v967, %v1013
    %v1015 = vsub.f32 1.0, %v1014
    %v1016 = vmul.f32 %v1013, %v1015
    %v1017 = vadd.f32 %v1013, %v1016
    %vm1018 = vweird.f32 %v967
    %vm1019 = vweird.f32 %v1013
    %vm1020 = vmor %vm1018, %vm1019
    %v1021 = vsel %vm1020, %v1013, %v1017
    %v1022 = vand.u32 2147483647, %v967
    %vm1023 = vcmp.eq.f32.partialorder %v1022, 8.507059e+37
    %v1024 = vand.u32 %v967, 2147483648
    %v1025 = vor.u32 1.1754944e-38, %v1024
    %v1026 = vsel %vm1023, %v1025, %v1021
    %v1027 = vmul.f32 %v934, %v1026
    %v1028 = vrcp.pop %v970
    %v1029 = vmul.f32 %v970, %v1028
    %v1030 = vsub.f32 1.0, %v1029
    %v1031 = vmul.f32 %v1028, %v1030
    %v1032 = vadd.f32 %v1028, %v1031
    %vm1033 = vweird.f32 %v970
    %vm1034 = vweird.f32 %v1028
    %vm1035 = vmor %vm1033, %vm1034
    %v1036 = vsel %vm1035, %v1028, %v1032
    %v1037 = vand.u32 2147483647, %v970
    %vm1038 = vcmp.eq.f32.partialorder %v1037, 8.507059e+37
    %v1039 = vand.u32 %v970, 2147483648
    %v1040 = vor.u32 1.1754944e-38, %v1039
    %v1041 = vsel %vm1038, %v1040, %v1036
    %v1042 = vmul.f32 %v936, %v1041
    %v1043 = vrcp.pop %v973
    %v1044 = vmul.f32 %v973, %v1043
    %v1045 = vsub.f32 1.0, %v1044
    %v1046 = vmul.f32 %v1043, %v1045
    %v1047 = vadd.f32 %v1043, %v1046
    %vm1048 = vweird.f32 %v973
    %vm1049 = vweird.f32 %v1043
    %vm1050 = vmor %vm1048, %vm1049
    %v1051 = vsel %vm1050, %v1043, %v1047
    %v1052 = vand.u32 2147483647, %v973
    %vm1053 = vcmp.eq.f32.partialorder %v1052, 8.507059e+37
    %v1054 = vand.u32 %v973, 2147483648
    %v1055 = vor.u32 1.1754944e-38, %v1054
    %v1056 = vsel %vm1053, %v1055, %v1051
    %v1057 = vmul.f32 %v938, %v1056
    %v1058 = vrcp.pop %v976
    %v1059 = vmul.f32 %v976, %v1058
    %v1060 = vsub.f32 1.0, %v1059
    %v1061 = vmul.f32 %v1058, %v1060
    %v1062 = vadd.f32 %v1058, %v1061
    %vm1063 = vweird.f32 %v976
    %vm1064 = vweird.f32 %v1058
    %vm1065 = vmor %vm1063, %vm1064
    %v1066 = vsel %vm1065, %v1058, %v1062
    %v1067 = vand.u32 2147483647, %v976
    %vm1068 = vcmp.eq.f32.partialorder %v1067, 8.507059e+37
    %v1069 = vand.u32 %v976, 2147483648
    %v1070 = vor.u32 1.1754944e-38, %v1069
    %v1071 = vsel %vm1068, %v1070, %v1066
    %v1072 = vmul.f32 %v940, %v1071
    %v1073 = vrcp.pop %v979
    %v1074 = vmul.f32 %v979, %v1073
    %v1075 = vsub.f32 1.0, %v1074
    %v1076 = vmul.f32 %v1073, %v1075
    %v1077 = vadd.f32 %v1073, %v1076
    %vm1078 = vweird.f32 %v979
    %vm1079 = vweird.f32 %v1073
    %vm1080 = vmor %vm1078, %vm1079
    %v1081 = vsel %vm1080, %v1073, %v1077
    %v1082 = vand.u32 2147483647, %v979
    %vm1083 = vcmp.eq.f32.partialorder %v1082, 8.507059e+37
    %v1084 = vand.u32 %v979, 2147483648
    %v1085 = vor.u32 1.1754944e-38, %v1084
    %v1086 = vsel %vm1083, %v1085, %v1081
    %v1087 = vmul.f32 %v942, %v1086
    %v1088 = vrcp.pop %v982
    %v1089 = vmul.f32 %v982, %v1088
    %v1090 = vsub.f32 1.0, %v1089
    %v1091 = vmul.f32 %v1088, %v1090
    %v1092 = vadd.f32 %v1088, %v1091
    %vm1093 = vweird.f32 %v982
    %vm1094 = vweird.f32 %v1088
    %vm1095 = vmor %vm1093, %vm1094
    %v1096 = vsel %vm1095, %v1088, %v1092
    %v1097 = vand.u32 2147483647, %v982
    %vm1098 = vcmp.eq.f32.partialorder %v1097, 8.507059e+37
    %v1099 = vand.u32 %v982, 2147483648
    %v1100 = vor.u32 1.1754944e-38, %v1099
    %v1101 = vsel %vm1098, %v1100, %v1096
    %v1102 = vmul.f32 %v944, %v1101
    %v1103 = vrcp.pop %v985
    %v1104 = vmul.f32 %v985, %v1103
    %v1105 = vsub.f32 1.0, %v1104
    %v1106 = vmul.f32 %v1103, %v1105
    %v1107 = vadd.f32 %v1103, %v1106
    %vm1108 = vweird.f32 %v985
    %vm1109 = vweird.f32 %v1103
    %vm1110 = vmor %vm1108, %vm1109
    %v1111 = vsel %vm1110, %v1103, %v1107
    %v1112 = vand.u32 2147483647, %v985
    %vm1113 = vcmp.eq.f32.partialorder %v1112, 8.507059e+37
    %v1114 = vand.u32 %v985, 2147483648
    %v1115 = vor.u32 1.1754944e-38, %v1114
    %v1116 = vsel %vm1113, %v1115, %v1111
    %v1117 = vmul.f32 %v946, %v1116
    %v1118 = vrcp.pop %v988
    %v1119 = vmul.f32 %v988, %v1118
    %v1120 = vsub.f32 1.0, %v1119
    %v1121 = vmul.f32 %v1118, %v1120
    %v1122 = vadd.f32 %v1118, %v1121
    %vm1123 = vweird.f32 %v988
    %vm1124 = vweird.f32 %v1118
    %vm1125 = vmor %vm1123, %vm1124
    %v1126 = vsel %vm1125, %v1118, %v1122
    %v1127 = vand.u32 2147483647, %v988
    %vm1128 = vcmp.eq.f32.partialorder %v1127, 8.507059e+37
    %v1129 = vand.u32 %v988, 2147483648
    %v1130 = vor.u32 1.1754944e-38, %v1129
    %v1131 = vsel %vm1128, %v1130, %v1126
    %v1132 = vmul.f32 %v948, %v1131
    %v1133 = vrcp.pop %v991
    %v1134 = vmul.f32 %v991, %v1133
    %v1135 = vsub.f32 1.0, %v1134
    %v1136 = vmul.f32 %v1133, %v1135
    %v1137 = vadd.f32 %v1133, %v1136
    %vm1138 = vweird.f32 %v991
    %vm1139 = vweird.f32 %v1133
    %vm1140 = vmor %vm1138, %vm1139
    %v1141 = vsel %vm1140, %v1133, %v1137
    %v1142 = vand.u32 2147483647, %v991
    %vm1143 = vcmp.eq.f32.partialorder %v1142, 8.507059e+37
    %v1144 = vand.u32 %v991, 2147483648
    %v1145 = vor.u32 1.1754944e-38, %v1144
    %v1146 = vsel %vm1143, %v1145, %v1141
    %v1147 = vmul.f32 %v950, %v1146
    %v1148 = vrcp.pop %v994
    %v1149 = vmul.f32 %v994, %v1148
    %v1150 = vsub.f32 1.0, %v1149
    %v1151 = vmul.f32 %v1148, %v1150
    %v1152 = vadd.f32 %v1148, %v1151
    %vm1153 = vweird.f32 %v994
    %vm1154 = vweird.f32 %v1148
    %vm1155 = vmor %vm1153, %vm1154
    %v1156 = vsel %vm1155, %v1148, %v1152
    %v1157 = vand.u32 2147483647, %v994
    %vm1158 = vcmp.eq.f32.partialorder %v1157, 8.507059e+37
    %v1159 = vand.u32 %v994, 2147483648
    %v1160 = vor.u32 1.1754944e-38, %v1159
    %v1161 = vsel %vm1158, %v1160, %v1156
    %v1162 = vmul.f32 %v952, %v1161
    %v1163 = vrcp.pop %v997
    %v1164 = vmul.f32 %v997, %v1163
    %v1165 = vsub.f32 1.0, %v1164
    %v1166 = vmul.f32 %v1163, %v1165
    %v1167 = vadd.f32 %v1163, %v1166
    %vm1168 = vweird.f32 %v997
    %vm1169 = vweird.f32 %v1163
    %vm1170 = vmor %vm1168, %vm1169
    %v1171 = vsel %vm1170, %v1163, %v1167
    %v1172 = vand.u32 2147483647, %v997
    %vm1173 = vcmp.eq.f32.partialorder %v1172, 8.507059e+37
    %v1174 = vand.u32 %v997, 2147483648
    %v1175 = vor.u32 1.1754944e-38, %v1174
    %v1176 = vsel %vm1173, %v1175, %v1171
    %v1177 = vmul.f32 %v954, %v1176
    %v1178 = vrcp.pop %v1000
    %v1179 = vmul.f32 %v1000, %v1178
    %v1180 = vsub.f32 1.0, %v1179
    %v1181 = vmul.f32 %v1178, %v1180
    %v1182 = vadd.f32 %v1178, %v1181
    %vm1183 = vweird.f32 %v1000
    %vm1184 = vweird.f32 %v1178
    %vm1185 = vmor %vm1183, %vm1184
    %v1186 = vsel %vm1185, %v1178, %v1182
    %v1187 = vand.u32 2147483647, %v1000
    %vm1188 = vcmp.eq.f32.partialorder %v1187, 8.507059e+37
    %v1189 = vand.u32 %v1000, 2147483648
    %v1190 = vor.u32 1.1754944e-38, %v1189
    %v1191 = vsel %vm1188, %v1190, %v1186
    %v1192 = vmul.f32 %v956, %v1191
    %v1193 = vrcp.pop %v1003
    %v1194 = vmul.f32 %v1003, %v1193
    %v1195 = vsub.f32 1.0, %v1194
    %v1196 = vmul.f32 %v1193, %v1195
    %v1197 = vadd.f32 %v1193, %v1196
    %vm1198 = vweird.f32 %v1003
    %vm1199 = vweird.f32 %v1193
    %vm1200 = vmor %vm1198, %vm1199
    %v1201 = vsel %vm1200, %v1193, %v1197
    %v1202 = vand.u32 2147483647, %v1003
    %vm1203 = vcmp.eq.f32.partialorder %v1202, 8.507059e+37
    %v1204 = vand.u32 %v1003, 2147483648
    %v1205 = vor.u32 1.1754944e-38, %v1204
    %v1206 = vsel %vm1203, %v1205, %v1201
    %v1207 = vmul.f32 %v958, %v1206
    %v1208 = vrcp.pop %v1006
    %v1209 = vmul.f32 %v1006, %v1208
    %v1210 = vsub.f32 1.0, %v1209
    %v1211 = vmul.f32 %v1208, %v1210
    %v1212 = vadd.f32 %v1208, %v1211
    %vm1213 = vweird.f32 %v1006
    %vm1214 = vweird.f32 %v1208
    %vm1215 = vmor %vm1213, %vm1214
    %v1216 = vsel %vm1215, %v1208, %v1212
    %v1217 = vand.u32 2147483647, %v1006
    %vm1218 = vcmp.eq.f32.partialorder %v1217, 8.507059e+37
    %v1219 = vand.u32 %v1006, 2147483648
    %v1220 = vor.u32 1.1754944e-38, %v1219
    %v1221 = vsel %vm1218, %v1220, %v1216
    %v1222 = vmul.f32 %v960, %v1221
    %v1223 = vrcp.pop %v1009
    %v1224 = vmul.f32 %v1009, %v1223
    %v1225 = vsub.f32 1.0, %v1224
    %v1226 = vmul.f32 %v1223, %v1225
    %v1227 = vadd.f32 %v1223, %v1226
    %vm1228 = vweird.f32 %v1009
    %vm1229 = vweird.f32 %v1223
    %vm1230 = vmor %vm1228, %vm1229
    %v1231 = vsel %vm1230, %v1223, %v1227
    %v1232 = vand.u32 2147483647, %v1009
    %vm1233 = vcmp.eq.f32.partialorder %v1232, 8.507059e+37
    %v1234 = vand.u32 %v1009, 2147483648
    %v1235 = vor.u32 1.1754944e-38, %v1234
    %v1236 = vsel %vm1233, %v1235, %v1231
    %v1237 = vmul.f32 %v962, %v1236
    %v1238 = vrcp.pop %v1012
    %v1239 = vmul.f32 %v1012, %v1238
    %v1240 = vsub.f32 1.0, %v1239
    %v1241 = vmul.f32 %v1238, %v1240
    %v1242 = vadd.f32 %v1238, %v1241
    %vm1243 = vweird.f32 %v1012
    %vm1244 = vweird.f32 %v1238
    %vm1245 = vmor %vm1243, %vm1244
    %v1246 = vsel %vm1245, %v1238, %v1242
    %v1247 = vand.u32 2147483647, %v1012
    %vm1248 = vcmp.eq.f32.partialorder %v1247, 8.507059e+37
    %v1249 = vand.u32 %v1012, 2147483648
    %v1250 = vor.u32 1.1754944e-38, %v1249
    %v1251 = vsel %vm1248, %v1250, %v1246
    %v1252 = vmul.f32 %v964, %v1251
    %v1254 = vsel %vm868, %v1027, 0
    %1256 = vmatpush.msra.mxu0 0.0
    %1257 = vmatpush.msra.mxu0 0.0
    %1258 = vmatpush.msra.mxu0 0.0
    %1259 = vmatpush.msra.mxu0 0.0
    %1260 = vmatpush.msra.mxu0 0.0
    %1261 = vmatpush.msra.mxu0 0.0
    %1262 = vmatpush.msra.mxu0 0.0
    %1263 = vmatpush.msra.mxu0 0.0
    %1264 = vmatpush.msra.mxu0 0.0
    %1265 = vmatpush.msra.mxu0 0.0
    %1266 = vmatpush.msra.mxu0 0.0
    %1267 = vmatpush.msra.mxu0 0.0
    %1268 = vmatpush.msra.mxu0 0.0
    %1269 = vmatpush.msra.mxu0 0.0
    %1270 = vmatpush.msra.mxu0 %v273
    %1271 = vmatpush.msra.mxu0 %v270
    %1272 = vmatmul.f32.gmra.mxu0 %v1254
    %v1273 = vpop.f32.mrf.mxu0
    %v1274 = vadd.f32 0.0, %v1273
    %1275 = vdwg.mxu0
    %1278 = vrot.lane.b32.xlu0 %v270, 120
    %v1279 = vpop.permute.xlu0 %1278
    %1280 = vrot.lane.b32.xlu0 %v273, 120
    %v1281 = vpop.permute.xlu0 %1280
    %v1285 = vsel %vm868, %v1042, 0
    %1287 = vmatpush.msra.mxu0 0.0
    %1288 = vmatpush.msra.mxu0 0.0
    %1289 = vmatpush.msra.mxu0 0.0
    %1290 = vmatpush.msra.mxu0 0.0
    %1291 = vmatpush.msra.mxu0 0.0
    %1292 = vmatpush.msra.mxu0 0.0
    %1293 = vmatpush.msra.mxu0 0.0
    %1294 = vmatpush.msra.mxu0 0.0
    %1295 = vmatpush.msra.mxu0 0.0
    %1296 = vmatpush.msra.mxu0 0.0
    %1297 = vmatpush.msra.mxu0 0.0
    %1298 = vmatpush.msra.mxu0 0.0
    %1299 = vmatpush.msra.mxu0 0.0
    %1300 = vmatpush.msra.mxu0 0.0
    %1301 = vmatpush.msra.mxu0 %v1281
    %1302 = vmatpush.msra.mxu0 %v1279
    %1303 = vmatmul.f32.gmra.mxu0 %v1285
    %v1304 = vpop.f32.mrf.mxu0
    %v1305 = vadd.f32 0.0, %v1304
    %1306 = vdwg.mxu0
    %1307 = vrot.lane.b32.xlu0 %v270, 112
    %v1308 = vpop.permute.xlu0 %1307
    %1309 = vrot.lane.b32.xlu0 %v273, 112
    %v1310 = vpop.permute.xlu0 %1309
    %v1314 = vsel %vm868, %v1057, 0
    %1316 = vmatpush.msra.mxu0 0.0
    %1317 = vmatpush.msra.mxu0 0.0
    %1318 = vmatpush.msra.mxu0 0.0
    %1319 = vmatpush.msra.mxu0 0.0
    %1320 = vmatpush.msra.mxu0 0.0
    %1321 = vmatpush.msra.mxu0 0.0
    %1322 = vmatpush.msra.mxu0 0.0
    %1323 = vmatpush.msra.mxu0 0.0
    %1324 = vmatpush.msra.mxu0 0.0
    %1325 = vmatpush.msra.mxu0 0.0
    %1326 = vmatpush.msra.mxu0 0.0
    %1327 = vmatpush.msra.mxu0 0.0
    %1328 = vmatpush.msra.mxu0 0.0
    %1329 = vmatpush.msra.mxu0 0.0
    %1330 = vmatpush.msra.mxu0 %v1310
    %1331 = vmatpush.msra.mxu0 %v1308
    %1332 = vmatmul.f32.gmra.mxu0 %v1314
    %v1333 = vpop.f32.mrf.mxu0
    %v1334 = vadd.f32 0.0, %v1333
    %1335 = vdwg.mxu0
    %1336 = vrot.lane.b32.xlu0 %v270, 104
    %v1337 = vpop.permute.xlu0 %1336
    %1338 = vrot.lane.b32.xlu0 %v273, 104
    %v1339 = vpop.permute.xlu0 %1338
    %v1343 = vsel %vm868, %v1072, 0
    %1345 = vmatpush.msra.mxu0 0.0
    %1346 = vmatpush.msra.mxu0 0.0
    %1347 = vmatpush.msra.mxu0 0.0
    %1348 = vmatpush.msra.mxu0 0.0
    %1349 = vmatpush.msra.mxu0 0.0
    %1350 = vmatpush.msra.mxu0 0.0
    %1351 = vmatpush.msra.mxu0 0.0
    %1352 = vmatpush.msra.mxu0 0.0
    %1353 = vmatpush.msra.mxu0 0.0
    %1354 = vmatpush.msra.mxu0 0.0
    %1355 = vmatpush.msra.mxu0 0.0
    %1356 = vmatpush.msra.mxu0 0.0
    %1357 = vmatpush.msra.mxu0 0.0
    %1358 = vmatpush.msra.mxu0 0.0
    %1359 = vmatpush.msra.mxu0 %v1339
    %1360 = vmatpush.msra.mxu0 %v1337
    %1361 = vmatmul.f32.gmra.mxu0 %v1343
    %v1362 = vpop.f32.mrf.mxu0
    %v1363 = vadd.f32 0.0, %v1362
    %1364 = vdwg.mxu0
    %1365 = vrot.lane.b32.xlu0 %v270, 96
    %v1366 = vpop.permute.xlu0 %1365
    %1367 = vrot.lane.b32.xlu0 %v273, 96
    %v1368 = vpop.permute.xlu0 %1367
    %v1372 = vsel %vm868, %v1087, 0
    %1374 = vmatpush.msra.mxu0 0.0
    %1375 = vmatpush.msra.mxu0 0.0
    %1376 = vmatpush.msra.mxu0 0.0
    %1377 = vmatpush.msra.mxu0 0.0
    %1378 = vmatpush.msra.mxu0 0.0
    %1379 = vmatpush.msra.mxu0 0.0
    %1380 = vmatpush.msra.mxu0 0.0
    %1381 = vmatpush.msra.mxu0 0.0
    %1382 = vmatpush.msra.mxu0 0.0
    %1383 = vmatpush.msra.mxu0 0.0
    %1384 = vmatpush.msra.mxu0 0.0
    %1385 = vmatpush.msra.mxu0 0.0
    %1386 = vmatpush.msra.mxu0 0.0
    %1387 = vmatpush.msra.mxu0 0.0
    %1388 = vmatpush.msra.mxu0 %v1368
    %1389 = vmatpush.msra.mxu0 %v1366
    %1390 = vmatmul.f32.gmra.mxu0 %v1372
    %v1391 = vpop.f32.mrf.mxu0
    %v1392 = vadd.f32 0.0, %v1391
    %1393 = vdwg.mxu0
    %1394 = vrot.lane.b32.xlu0 %v270, 88
    %v1395 = vpop.permute.xlu0 %1394
    %1396 = vrot.lane.b32.xlu0 %v273, 88
    %v1397 = vpop.permute.xlu0 %1396
    %v1401 = vsel %vm868, %v1102, 0
    %1403 = vmatpush.msra.mxu0 0.0
    %1404 = vmatpush.msra.mxu0 0.0
    %1405 = vmatpush.msra.mxu0 0.0
    %1406 = vmatpush.msra.mxu0 0.0
    %1407 = vmatpush.msra.mxu0 0.0
    %1408 = vmatpush.msra.mxu0 0.0
    %1409 = vmatpush.msra.mxu0 0.0
    %1410 = vmatpush.msra.mxu0 0.0
    %1411 = vmatpush.msra.mxu0 0.0
    %1412 = vmatpush.msra.mxu0 0.0
    %1413 = vmatpush.msra.mxu0 0.0
    %1414 = vmatpush.msra.mxu0 0.0
    %1415 = vmatpush.msra.mxu0 0.0
    %1416 = vmatpush.msra.mxu0 0.0
    %1417 = vmatpush.msra.mxu0 %v1397
    %1418 = vmatpush.msra.mxu0 %v1395
    %1419 = vmatmul.f32.gmra.mxu0 %v1401
    %v1420 = vpop.f32.mrf.mxu0
    %v1421 = vadd.f32 0.0, %v1420
    %1422 = vdwg.mxu0
    %1423 = vrot.lane.b32.xlu0 %v270, 80
    %v1424 = vpop.permute.xlu0 %1423
    %1425 = vrot.lane.b32.xlu0 %v273, 80
    %v1426 = vpop.permute.xlu0 %1425
    %v1430 = vsel %vm868, %v1117, 0
    %1432 = vmatpush.msra.mxu0 0.0
    %1433 = vmatpush.msra.mxu0 0.0
    %1434 = vmatpush.msra.mxu0 0.0
    %1435 = vmatpush.msra.mxu0 0.0
    %1436 = vmatpush.msra.mxu0 0.0
    %1437 = vmatpush.msra.mxu0 0.0
    %1438 = vmatpush.msra.mxu0 0.0
    %1439 = vmatpush.msra.mxu0 0.0
    %1440 = vmatpush.msra.mxu0 0.0
    %1441 = vmatpush.msra.mxu0 0.0
    %1442 = vmatpush.msra.mxu0 0.0
    %1443 = vmatpush.msra.mxu0 0.0
    %1444 = vmatpush.msra.mxu0 0.0
    %1445 = vmatpush.msra.mxu0 0.0
    %1446 = vmatpush.msra.mxu0 %v1426
    %1447 = vmatpush.msra.mxu0 %v1424
    %1448 = vmatmul.f32.gmra.mxu0 %v1430
    %v1449 = vpop.f32.mrf.mxu0
    %v1450 = vadd.f32 0.0, %v1449
    %1451 = vdwg.mxu0
    %1452 = vrot.lane.b32.xlu0 %v270, 72
    %v1453 = vpop.permute.xlu0 %1452
    %1454 = vrot.lane.b32.xlu0 %v273, 72
    %v1455 = vpop.permute.xlu0 %1454
    %v1459 = vsel %vm868, %v1132, 0
    %1461 = vmatpush.msra.mxu0 0.0
    %1462 = vmatpush.msra.mxu0 0.0
    %1463 = vmatpush.msra.mxu0 0.0
    %1464 = vmatpush.msra.mxu0 0.0
    %1465 = vmatpush.msra.mxu0 0.0
    %1466 = vmatpush.msra.mxu0 0.0
    %1467 = vmatpush.msra.mxu0 0.0
    %1468 = vmatpush.msra.mxu0 0.0
    %1469 = vmatpush.msra.mxu0 0.0
    %1470 = vmatpush.msra.mxu0 0.0
    %1471 = vmatpush.msra.mxu0 0.0
    %1472 = vmatpush.msra.mxu0 0.0
    %1473 = vmatpush.msra.mxu0 0.0
    %1474 = vmatpush.msra.mxu0 0.0
    %1475 = vmatpush.msra.mxu0 %v1455
    %1476 = vmatpush.msra.mxu0 %v1453
    %1477 = vmatmul.f32.gmra.mxu0 %v1459
    %v1478 = vpop.f32.mrf.mxu0
    %v1479 = vadd.f32 0.0, %v1478
    %1480 = vdwg.mxu0
    %1482 = vrot.lane.b32.xlu0 %v1305, 8
    %v1483 = vpop.permute.xlu0 %1482
    %1486 = vrot.lane.b32.xlu0 %v1334, 16
    %v1487 = vpop.permute.xlu0 %1486
    %1490 = vrot.lane.b32.xlu0 %v1363, 24
    %v1491 = vpop.permute.xlu0 %1490
    %1494 = vrot.lane.b32.xlu0 %v1392, 32
    %v1495 = vpop.permute.xlu0 %1494
    %1498 = vrot.lane.b32.xlu0 %v1421, 40
    %v1499 = vpop.permute.xlu0 %1498
    %1502 = vrot.lane.b32.xlu0 %v1450, 48
    %v1503 = vpop.permute.xlu0 %1502
    %1506 = vrot.lane.b32.xlu0 %v1479, 56
    %v1507 = vpop.permute.xlu0 %1506
    %v1509 = vsel %vm285, %v1274, %v1483
    %v1510 = vsel %vm868, %v1509, %v1487
    %vm1511 = vcmask 195584
    %v1512 = vsel %vm1511, %v1510, %v1491
    %vm1513 = vcmask 261120
    %v1514 = vsel %vm1513, %v1512, %v1495
    %vm1515 = vcmask 326656
    %v1516 = vsel %vm1515, %v1514, %v1499
    %vm1517 = vcmask 392192
    %v1518 = vsel %vm1517, %v1516, %v1503
    %vm1519 = vcmask 457728
    %v1520 = vsel %vm1519, %v1518, %v1507
    %v1522 = vsel %vm868, %v1147, 0
    %1524 = vmatpush.msra.mxu0 0.0
    %1525 = vmatpush.msra.mxu0 0.0
    %1526 = vmatpush.msra.mxu0 0.0
    %1527 = vmatpush.msra.mxu0 0.0
    %1528 = vmatpush.msra.mxu0 0.0
    %1529 = vmatpush.msra.mxu0 0.0
    %1530 = vmatpush.msra.mxu0 0.0
    %1531 = vmatpush.msra.mxu0 0.0
    %1532 = vmatpush.msra.mxu0 0.0
    %1533 = vmatpush.msra.mxu0 0.0
    %1534 = vmatpush.msra.mxu0 0.0
    %1535 = vmatpush.msra.mxu0 0.0
    %1536 = vmatpush.msra.mxu0 0.0
    %1537 = vmatpush.msra.mxu0 0.0
    %1538 = vmatpush.msra.mxu0 %v279
    %1539 = vmatpush.msra.mxu0 %v276
    %1540 = vmatmul.f32.gmra.mxu0 %v1522
    %v1541 = vpop.f32.mrf.mxu0
    %v1542 = vadd.f32 0.0, %v1541
    %1543 = vdwg.mxu0
    %1546 = vrot.lane.b32.xlu0 %v276, 120
    %v1547 = vpop.permute.xlu0 %1546
    %1548 = vrot.lane.b32.xlu0 %v279, 120
    %v1549 = vpop.permute.xlu0 %1548
    %v1553 = vsel %vm868, %v1162, 0
    %1555 = vmatpush.msra.mxu0 0.0
    %1556 = vmatpush.msra.mxu0 0.0
    %1557 = vmatpush.msra.mxu0 0.0
    %1558 = vmatpush.msra.mxu0 0.0
    %1559 = vmatpush.msra.mxu0 0.0
    %1560 = vmatpush.msra.mxu0 0.0
    %1561 = vmatpush.msra.mxu0 0.0
    %1562 = vmatpush.msra.mxu0 0.0
    %1563 = vmatpush.msra.mxu0 0.0
    %1564 = vmatpush.msra.mxu0 0.0
    %1565 = vmatpush.msra.mxu0 0.0
    %1566 = vmatpush.msra.mxu0 0.0
    %1567 = vmatpush.msra.mxu0 0.0
    %1568 = vmatpush.msra.mxu0 0.0
    %1569 = vmatpush.msra.mxu0 %v1549
    %1570 = vmatpush.msra.mxu0 %v1547
    %1571 = vmatmul.f32.gmra.mxu0 %v1553
    %v1572 = vpop.f32.mrf.mxu0
    %v1573 = vadd.f32 0.0, %v1572
    %1574 = vdwg.mxu0
    %1575 = vrot.lane.b32.xlu0 %v276, 112
    %v1576 = vpop.permute.xlu0 %1575
    %1577 = vrot.lane.b32.xlu0 %v279, 112
    %v1578 = vpop.permute.xlu0 %1577
    %v1582 = vsel %vm868, %v1177, 0
    %1584 = vmatpush.msra.mxu0 0.0
    %1585 = vmatpush.msra.mxu0 0.0
    %1586 = vmatpush.msra.mxu0 0.0
    %1587 = vmatpush.msra.mxu0 0.0
    %1588 = vmatpush.msra.mxu0 0.0
    %1589 = vmatpush.msra.mxu0 0.0
    %1590 = vmatpush.msra.mxu0 0.0
    %1591 = vmatpush.msra.mxu0 0.0
    %1592 = vmatpush.msra.mxu0 0.0
    %1593 = vmatpush.msra.mxu0 0.0
    %1594 = vmatpush.msra.mxu0 0.0
    %1595 = vmatpush.msra.mxu0 0.0
    %1596 = vmatpush.msra.mxu0 0.0
    %1597 = vmatpush.msra.mxu0 0.0
    %1598 = vmatpush.msra.mxu0 %v1578
    %1599 = vmatpush.msra.mxu0 %v1576
    %1600 = vmatmul.f32.gmra.mxu0 %v1582
    %v1601 = vpop.f32.mrf.mxu0
    %v1602 = vadd.f32 0.0, %v1601
    %1603 = vdwg.mxu0
    %1604 = vrot.lane.b32.xlu0 %v276, 104
    %v1605 = vpop.permute.xlu0 %1604
    %1606 = vrot.lane.b32.xlu0 %v279, 104
    %v1607 = vpop.permute.xlu0 %1606
    %v1611 = vsel %vm868, %v1192, 0
    %1613 = vmatpush.msra.mxu0 0.0
    %1614 = vmatpush.msra.mxu0 0.0
    %1615 = vmatpush.msra.mxu0 0.0
    %1616 = vmatpush.msra.mxu0 0.0
    %1617 = vmatpush.msra.mxu0 0.0
    %1618 = vmatpush.msra.mxu0 0.0
    %1619 = vmatpush.msra.mxu0 0.0
    %1620 = vmatpush.msra.mxu0 0.0
    %1621 = vmatpush.msra.mxu0 0.0
    %1622 = vmatpush.msra.mxu0 0.0
    %1623 = vmatpush.msra.mxu0 0.0
    %1624 = vmatpush.msra.mxu0 0.0
    %1625 = vmatpush.msra.mxu0 0.0
    %1626 = vmatpush.msra.mxu0 0.0
    %1627 = vmatpush.msra.mxu0 %v1607
    %1628 = vmatpush.msra.mxu0 %v1605
    %1629 = vmatmul.f32.gmra.mxu0 %v1611
    %v1630 = vpop.f32.mrf.mxu0
    %v1631 = vadd.f32 0.0, %v1630
    %1632 = vdwg.mxu0
    %1633 = vrot.lane.b32.xlu0 %v276, 96
    %v1634 = vpop.permute.xlu0 %1633
    %1635 = vrot.lane.b32.xlu0 %v279, 96
    %v1636 = vpop.permute.xlu0 %1635
    %v1640 = vsel %vm868, %v1207, 0
    %1642 = vmatpush.msra.mxu0 0.0
    %1643 = vmatpush.msra.mxu0 0.0
    %1644 = vmatpush.msra.mxu0 0.0
    %1645 = vmatpush.msra.mxu0 0.0
    %1646 = vmatpush.msra.mxu0 0.0
    %1647 = vmatpush.msra.mxu0 0.0
    %1648 = vmatpush.msra.mxu0 0.0
    %1649 = vmatpush.msra.mxu0 0.0
    %1650 = vmatpush.msra.mxu0 0.0
    %1651 = vmatpush.msra.mxu0 0.0
    %1652 = vmatpush.msra.mxu0 0.0
    %1653 = vmatpush.msra.mxu0 0.0
    %1654 = vmatpush.msra.mxu0 0.0
    %1655 = vmatpush.msra.mxu0 0.0
    %1656 = vmatpush.msra.mxu0 %v1636
    %1657 = vmatpush.msra.mxu0 %v1634
    %1658 = vmatmul.f32.gmra.mxu0 %v1640
    %v1659 = vpop.f32.mrf.mxu0
    %v1660 = vadd.f32 0.0, %v1659
    %1661 = vdwg.mxu0
    %1662 = vrot.lane.b32.xlu0 %v276, 88
    %v1663 = vpop.permute.xlu0 %1662
    %1664 = vrot.lane.b32.xlu0 %v279, 88
    %v1665 = vpop.permute.xlu0 %1664
    %v1669 = vsel %vm868, %v1222, 0
    %1671 = vmatpush.msra.mxu0 0.0
    %1672 = vmatpush.msra.mxu0 0.0
    %1673 = vmatpush.msra.mxu0 0.0
    %1674 = vmatpush.msra.mxu0 0.0
    %1675 = vmatpush.msra.mxu0 0.0
    %1676 = vmatpush.msra.mxu0 0.0
    %1677 = vmatpush.msra.mxu0 0.0
    %1678 = vmatpush.msra.mxu0 0.0
    %1679 = vmatpush.msra.mxu0 0.0
    %1680 = vmatpush.msra.mxu0 0.0
    %1681 = vmatpush.msra.mxu0 0.0
    %1682 = vmatpush.msra.mxu0 0.0
    %1683 = vmatpush.msra.mxu0 0.0
    %1684 = vmatpush.msra.mxu0 0.0
    %1685 = vmatpush.msra.mxu0 %v1665
    %1686 = vmatpush.msra.mxu0 %v1663
    %1687 = vmatmul.f32.gmra.mxu0 %v1669
    %v1688 = vpop.f32.mrf.mxu0
    %v1689 = vadd.f32 0.0, %v1688
    %1690 = vdwg.mxu0
    %1691 = vrot.lane.b32.xlu0 %v276, 80
    %v1692 = vpop.permute.xlu0 %1691
    %1693 = vrot.lane.b32.xlu0 %v279, 80
    %v1694 = vpop.permute.xlu0 %1693
    %v1698 = vsel %vm868, %v1237, 0
    %1700 = vmatpush.msra.mxu0 0.0
    %1701 = vmatpush.msra.mxu0 0.0
    %1702 = vmatpush.msra.mxu0 0.0
    %1703 = vmatpush.msra.mxu0 0.0
    %1704 = vmatpush.msra.mxu0 0.0
    %1705 = vmatpush.msra.mxu0 0.0
    %1706 = vmatpush.msra.mxu0 0.0
    %1707 = vmatpush.msra.mxu0 0.0
    %1708 = vmatpush.msra.mxu0 0.0
    %1709 = vmatpush.msra.mxu0 0.0
    %1710 = vmatpush.msra.mxu0 0.0
    %1711 = vmatpush.msra.mxu0 0.0
    %1712 = vmatpush.msra.mxu0 0.0
    %1713 = vmatpush.msra.mxu0 0.0
    %1714 = vmatpush.msra.mxu0 %v1694
    %1715 = vmatpush.msra.mxu0 %v1692
    %1716 = vmatmul.f32.gmra.mxu0 %v1698
    %v1717 = vpop.f32.mrf.mxu0
    %v1718 = vadd.f32 0.0, %v1717
    %1719 = vdwg.mxu0
    %1720 = vrot.lane.b32.xlu0 %v276, 72
    %v1721 = vpop.permute.xlu0 %1720
    %1722 = vrot.lane.b32.xlu0 %v279, 72
    %v1723 = vpop.permute.xlu0 %1722
    %v1727 = vsel %vm868, %v1252, 0
    %1729 = vmatpush.msra.mxu0 0.0
    %1730 = vmatpush.msra.mxu0 0.0
    %1731 = vmatpush.msra.mxu0 0.0
    %1732 = vmatpush.msra.mxu0 0.0
    %1733 = vmatpush.msra.mxu0 0.0
    %1734 = vmatpush.msra.mxu0 0.0
    %1735 = vmatpush.msra.mxu0 0.0
    %1736 = vmatpush.msra.mxu0 0.0
    %1737 = vmatpush.msra.mxu0 0.0
    %1738 = vmatpush.msra.mxu0 0.0
    %1739 = vmatpush.msra.mxu0 0.0
    %1740 = vmatpush.msra.mxu0 0.0
    %1741 = vmatpush.msra.mxu0 0.0
    %1742 = vmatpush.msra.mxu0 0.0
    %1743 = vmatpush.msra.mxu0 %v1723
    %1744 = vmatpush.msra.mxu0 %v1721
    %1745 = vmatmul.f32.gmra.mxu0 %v1727
    %v1746 = vpop.f32.mrf.mxu0
    %v1747 = vadd.f32 0.0, %v1746
    %1748 = vdwg.mxu0
    %1750 = vrot.lane.b32.xlu0 %v1573, 8
    %v1751 = vpop.permute.xlu0 %1750
    %1754 = vrot.lane.b32.xlu0 %v1602, 16
    %v1755 = vpop.permute.xlu0 %1754
    %1758 = vrot.lane.b32.xlu0 %v1631, 24
    %v1759 = vpop.permute.xlu0 %1758
    %1762 = vrot.lane.b32.xlu0 %v1660, 32
    %v1763 = vpop.permute.xlu0 %1762
    %1766 = vrot.lane.b32.xlu0 %v1689, 40
    %v1767 = vpop.permute.xlu0 %1766
    %1770 = vrot.lane.b32.xlu0 %v1718, 48
    %v1771 = vpop.permute.xlu0 %1770
    %1774 = vrot.lane.b32.xlu0 %v1747, 56
    %v1775 = vpop.permute.xlu0 %1774
    %v1777 = vsel %vm285, %v1542, %v1751
    %v1778 = vsel %vm868, %v1777, %v1755
    %v1779 = vsel %vm1511, %v1778, %v1759
    %v1780 = vsel %vm1513, %v1779, %v1763
    %v1781 = vsel %vm1515, %v1780, %v1767
    %v1782 = vsel %vm1517, %v1781, %v1771
    %v1783 = vsel %vm1519, %v1782, %v1775
    %s1784 = scalar_lea.vmem [#allocation12], 192
    %v1785 = vld [vmem:[%s1784] sm:$0xff]
    %v1786 = vld [vmem:[%s1784 + $0x8] sm:$0xff]
    %v1787 = vld [vmem:[%s1784 + $0x10] sm:$0xff]
    %v1788 = vld [vmem:[%s1784 + $0x18] sm:$0xff]
    %v1789 = vld [vmem:[%s1784 + $0x20] sm:$0xff]
    %v1790 = vld [vmem:[%s1784 + $0x28] sm:$0xff]
    %v1791 = vld [vmem:[%s1784 + $0x30] sm:$0xff]
    %v1792 = vld [vmem:[%s1784 + $0x38] sm:$0xff]
    %s1793 = scalar_lea.vmem %s7, 3
    %v1794 = vld [vmem:[%s1793] sm:$0x1]
    %v1796 = vperm.slane %v1794, 0
    %v1799 = vsel %vm139, %v1520, 0
    %v1802 = vsel %vm139, %v1783, 0
    %1804 = vmatpush.msra.mxu0 0.0
    %1805 = vmatpush.msra.mxu0 0.0
    %1806 = vmatpush.msra.mxu0 0.0
    %1807 = vmatpush.msra.mxu0 0.0
    %1808 = vmatpush.msra.mxu0 0.0
    %1809 = vmatpush.msra.mxu0 0.0
    %1810 = vmatpush.msra.mxu0 0.0
    %1811 = vmatpush.msra.mxu0 0.0
    %1812 = vmatpush.msra.mxu0 %v1792
    %1813 = vmatpush.msra.mxu0 %v1791
    %1814 = vmatpush.msra.mxu0 %v1790
    %1815 = vmatpush.msra.mxu0 %v1789
    %1816 = vmatpush.msra.mxu0 %v1788
    %1817 = vmatpush.msra.mxu0 %v1787
    %1818 = vmatpush.msra.mxu0 %v1786
    %1819 = vmatpush.msra.mxu0 %v1785
    %1820 = vmatmul.f32.gmra.mxu0 %v1799
    %v1821 = vpop.f32.mrf.mxu0
    %v1822 = vadd.f32 %v1796, %v1821
    %1823 = vmatmul.f32.gmra.mxu0 %v1802
    %v1824 = vpop.f32.mrf.mxu0
    %v1825 = vadd.f32 %v1796, %v1824
    %1826 = vdwg.mxu0
    %1827 = vst.msk [vmem:[#allocation13] sm:$0xff] %vm139, %v1822
    %s1828 = scalar_lea.vmem [#allocation13], 8
    %1829 = vst.msk [vmem:[%s1828] sm:$0xff] %vm139, %v1825
    // Predicated region
    $region50: #{soft_masked_attention.1} parent=1 // pred_check
      _
    $region51: #{soft_masked_attention.1} parent=1 // pred_check_branch
      %1831 = sbr.rel (0) target = $region53
    $region52: #{soft_masked_attention.1} parent=1 // pred_region
      %1833 = vsyncadd [#allocation6], 0
      %s1834 = sshll.u32 [#allocation13], 4
      %s1835 = int_to_ptr.vmem [resolvable:$true] %s1834
      %s1836 = sshll.u32 %s8, 4
      %s1837 = int_to_ptr.hbm [resolvable:$true] %s1836
      %1842 = dma.vmem_to_hbm [thread:$0]  %s1835, 256, %s1837, [#allocation6], 128, 128, 8
    $region53: #{soft_masked_attention.1} parent=1 // pred_fallthru
      _
    // Predicated region
    $region54: #{soft_masked_attention.1} parent=1 // pred_check
      _
    $region55: #{soft_masked_attention.1} parent=1 // pred_check_branch
      %1844 = sbr.rel (0) target = $region57
    $region56: #{soft_masked_attention.1} parent=1 // pred_region
      %1846 = dma.done [#allocation6], 256
    $region57: #{soft_masked_attention.1} parent=1 // pred_fallthru
      _
    %1847 = vsyncpa [#allocation5], 1
    %1848 = vsyncpa [#allocation8], 1
    %1849 = vsyncpa [#allocation11], 1
    %1850 = vsyncpa [#allocation6], 1

</llo_original>
